<compile_context>
chip_gen: v7x
topology: tpu7x:2x2x1
jax: 0.10.0
libtpu: 0.0.40
codegen_flags: <defaults>
</compile_context>

<pallas_src>
import math

import jax
import jax.numpy as jnp
from jax.experimental import pallas as pl
from jax.experimental.pallas import tpu as pltpu

# ---- logical module hyper-parameters (NgnMlp defaults, mnist / c10=False) ----
INPUT_SIZE = 784
LAYER_SIZE = [250, 250, 500]
OUTPUT_SIZE = 10


def _round_up(x, m):
    return ((x + m - 1) // m) * m


# ---- padded (lane-dense, 128-aligned) hidden/output dims used by the kernel ----
# The input dim stays at 784 (full-extent block; divisible by 8/16 sublanes).
PAD_H0 = _round_up(LAYER_SIZE[0], 128)    # 256
PAD_H1 = _round_up(LAYER_SIZE[1], 128)    # 256
PAD_H2 = _round_up(LAYER_SIZE[2], 128)    # 512
PAD_OUT = _round_up(OUTPUT_SIZE, 128)     # 128

TM_MAX = 512      # cap on the batch tile (amortizes ~0.35us/step overhead)
NEG_BIG = -1e30   # finite "-inf" bias for padded logit lanes


def _pick_tm(b):
    """Adaptive batch tile: sublane-friendly, small for tiny batches, and
    <= ceil(B/2) for larger batches so the grid keeps >=2 steps (v7x 2 TCs)."""
    b16 = _round_up(b, 16)
    if b16 <= 32:
        return b16
    return min(TM_MAX, _round_up((b16 + 1) // 2, 16))


def _mlp_kernel(x_ref,
                w0_ref, b0_ref,
                w1_ref, b1_ref,
                w2_ref, b2_ref,
                w3_ref, mask_ref,
                o_ref):
    """Fused 4-layer MLP on one (TM, 784) batch tile; weights stay resident."""
    x = x_ref[...].astype(jnp.bfloat16)                                # f32 -> bf16 on VPU

    h = jnp.dot(x, w0_ref[...], preferred_element_type=jnp.float32) + b0_ref[...]
    h = jnp.maximum(h, 0.0).astype(jnp.bfloat16)

    h = jnp.dot(h, w1_ref[...], preferred_element_type=jnp.float32) + b1_ref[...]
    h = jnp.maximum(h, 0.0).astype(jnp.bfloat16)

    h = jnp.dot(h, w2_ref[...], preferred_element_type=jnp.float32) + b2_ref[...]
    h = jnp.maximum(h, 0.0).astype(jnp.bfloat16)

    # fc3 (no bias) + mask-bias row: 0 for the 10 real classes, -1e30 for pads
    logits = jnp.dot(h, w3_ref[...], preferred_element_type=jnp.float32) + mask_ref[...]

    # log_softmax along the lane (class) axis
    m = jnp.max(logits, axis=-1, keepdims=True)
    shifted = logits - m
    lse = jnp.log(jnp.sum(jnp.exp(shifted), axis=-1, keepdims=True))
    o_ref[...] = shifted - lse


def pack_params(params):
    """Pad logical f32 params to kernel shapes; weights -> bf16, biases/mask -> f32."""
    (w0, b0), (w1, b1), (w2, b2), (w3,) = params

    def pad_w(w, rows, cols):
        return jnp.pad(w, ((0, rows - w.shape[0]), (0, cols - w.shape[1]))
                       ).astype(jnp.bfloat16)

    def pad_b(bv, cols):
        return jnp.pad(bv, ((0, 0), (0, cols - bv.shape[1]))).astype(jnp.float32)

    mask = jnp.where(jnp.arange(PAD_OUT) < OUTPUT_SIZE, 0.0, NEG_BIG
                     ).astype(jnp.float32).reshape(1, PAD_OUT)

    return (pad_w(w0, INPUT_SIZE, PAD_H0), pad_b(b0, PAD_H0),
            pad_w(w1, PAD_H0, PAD_H1), pad_b(b1, PAD_H1),
            pad_w(w2, PAD_H1, PAD_H2), pad_b(b2, PAD_H2),
            pad_w(w3, PAD_H2, PAD_OUT), mask)


def ngn_mlp_forward(x, packed_params):
    """x: (B, C, H, W) or (B, input_size), any float dtype. Returns log-probs (B, 10)."""
    b = x.shape[0]
    x2d = x.reshape(b, INPUT_SIZE).astype(jnp.float32)

    tm = _pick_tm(b)
    b_pad = _round_up(b, tm)
    if b_pad != b:
        x2d = jnp.pad(x2d, ((0, b_pad - b), (0, 0)))

    w0, b0, w1, b1, w2, b2, w3, mask = packed_params
    grid = (b_pad // tm,)

    def batch_spec(cols):
        # activation / output tiles walk the batch grid axis
        return pl.BlockSpec((tm, cols), lambda i: (i, 0))

    def resident_spec(shape):
        # constant block index -> DMA'd once, stays resident in VMEM
        return pl.BlockSpec(shape, lambda i: (0, 0))

    out = pl.pallas_call(
        _mlp_kernel,
        out_shape=jax.ShapeDtypeStruct((b_pad, PAD_OUT), jnp.float32),
        grid_spec=pltpu.PrefetchScalarGridSpec(
            num_scalar_prefetch=0,
            grid=grid,
            in_specs=[
                batch_spec(INPUT_SIZE),
                resident_spec((INPUT_SIZE, PAD_H0)), resident_spec((1, PAD_H0)),
                resident_spec((PAD_H0, PAD_H1)), resident_spec((1, PAD_H1)),
                resident_spec((PAD_H1, PAD_H2)), resident_spec((1, PAD_H2)),
                resident_spec((PAD_H2, PAD_OUT)), resident_spec((1, PAD_OUT)),
            ],
            out_specs=batch_spec(PAD_OUT),
        ),
        compiler_params=pltpu.CompilerParams(
            dimension_semantics=("parallel",),
        ),
    )(x2d, w0, b0, w1, b1, w2, b2, w3, mask)

    return out[:b, :OUTPUT_SIZE]


def init_params(key):
    """Deterministic PyTorch-Linear-style init: U(-1/sqrt(fan_in), 1/sqrt(fan_in)).
    Weights stored as (in_features, out_features) so kernel computes x @ W + b."""
    dims = [INPUT_SIZE] + LAYER_SIZE + [OUTPUT_SIZE]
    params = []
    keys = jax.random.split(key, 2 * (len(dims) - 1))
    for i in range(len(dims) - 1):
        fan_in, fan_out = dims[i], dims[i + 1]
        bound = 1.0 / math.sqrt(fan_in)
        w = jax.random.uniform(keys[2 * i], (fan_in, fan_out),
                               minval=-bound, maxval=bound, dtype=jnp.float32)
        if i < len(dims) - 2:  # hidden layers have bias
            bvec = jax.random.uniform(keys[2 * i + 1], (1, fan_out),
                                      minval=-bound, maxval=bound, dtype=jnp.float32)
            params.append((w, bvec))
        else:                  # final layer: bias=False
            params.append((w,))
    return params


def reference_forward_f32(x, params):
    """Pure-f32 reference matching the PyTorch module semantics."""
    b = x.shape[0]
    h = x.reshape(b, INPUT_SIZE).astype(jnp.float32)
    (w0, b0), (w1, b1), (w2, b2), (w3,) = params
    h = jnp.maximum(h @ w0 + b0, 0.0)
    h = jnp.maximum(h @ w1 + b1, 0.0)
    h = jnp.maximum(h @ w2 + b2, 0.0)
    return jax.nn.log_softmax(h @ w3, axis=1)


def reference_forward_bf16(x, params):
    """Reference with the same bf16-input / f32-accumulate precision as the kernel."""
    b = x.shape[0]
    h = x.reshape(b, INPUT_SIZE).astype(jnp.float32).astype(jnp.bfloat16)
    (w0, b0), (w1, b1), (w2, b2), (w3,) = params

    def layer(h, w, bias):
        y = jnp.dot(h, w.astype(jnp.bfloat16),
                    preferred_element_type=jnp.float32) + bias
        return jnp.maximum(y, 0.0).astype(jnp.bfloat16)

    h = layer(h, w0, b0)
    h = layer(h, w1, b1)
    h = layer(h, w2, b2)
    logits = jnp.dot(h, w3.astype(jnp.bfloat16), preferred_element_type=jnp.float32)
    return jax.nn.log_softmax(logits, axis=1)


if __name__ == "__main__":
    key = jax.random.PRNGKey(0)
    k_x, k_p = jax.random.split(key)

    BATCH = 8
    # MNIST-like input: (batch, 1, 28, 28) -> viewed as (batch, 784) inside forward.
    x = jax.random.normal(k_x, (BATCH, 1, 28, 28), dtype=jnp.float32)
    params = init_params(k_p)
    packed = pack_params(params)

    out = jax.block_until_ready(ngn_mlp_forward(x, packed))
    assert out.shape == (BATCH, OUTPUT_SIZE)

    ref_bf16 = reference_forward_bf16(x, params)
    ref_f32 = reference_forward_f32(x, params)
    assert jnp.allclose(out, ref_bf16, atol=2e-3, rtol=2e-3), "mismatch vs bf16 reference"
    assert jnp.allclose(out, ref_f32, atol=3e-2, rtol=3e-2), "mismatch vs f32 reference"

    # Larger batch exercises the multi-tile (grid >= 2), weight-resident pipeline.
    x_big = jax.random.normal(k_x, (256, 1, 28, 28), dtype=jnp.float32)
    out_big = jax.block_until_ready(ngn_mlp_forward(x_big, packed))
    ref_big = reference_forward_bf16(x_big, params)
    assert out_big.shape == (256, OUTPUT_SIZE)
    assert jnp.allclose(out_big, ref_big, atol=2e-3, rtol=2e-3), "mismatch at batch=256"

    # Odd, non-tile-aligned batch exercises batch padding + tail slicing.
    x_odd = jax.random.normal(k_x, (37, 1, 28, 28), dtype=jnp.float32)
    out_odd = jax.block_until_ready(ngn_mlp_forward(x_odd, packed))
    ref_odd = reference_forward_bf16(x_odd, params)
    assert out_odd.shape == (37, OUTPUT_SIZE)
    assert jnp.allclose(out_odd, ref_odd, atol=2e-3, rtol=2e-3), "mismatch at batch=37"

    print("KERNEL_OK")
</pallas_src>

<mosaic_0001>
module attributes {stable_mosaic.version = 11 : i64} {
  func.func @_mlp_kernel(%arg0: i32, %arg1: memref<16x784xf32, #tpu.memory_space<vmem>>, %arg2: memref<784x256xbf16, #tpu.memory_space<vmem>>, %arg3: memref<1x256xf32, #tpu.memory_space<vmem>>, %arg4: memref<256x256xbf16, #tpu.memory_space<vmem>>, %arg5: memref<1x256xf32, #tpu.memory_space<vmem>>, %arg6: memref<256x512xbf16, #tpu.memory_space<vmem>>, %arg7: memref<1x512xf32, #tpu.memory_space<vmem>>, %arg8: memref<512x128xbf16, #tpu.memory_space<vmem>>, %arg9: memref<1x128xf32, #tpu.memory_space<vmem>>, %arg10: memref<16x128xf32, #tpu.memory_space<vmem>>) attributes {dimension_semantics = [#tpu.dimension_semantics<parallel>], iteration_bounds = array<i64: 1>, scalar_prefetch = 0 : i64, scratch_operands = 0 : i64, tpu.core_type = #tpu.core_type<tc>, window_params = [{transform_indices = @transform_0, window_bounds = array<i64: 16, 784>}, {pipeline_mode = #tpu.pipeline_mode<synchronous>, transform_indices = @transform_1, window_bounds = array<i64: 784, 256>}, {pipeline_mode = #tpu.pipeline_mode<synchronous>, transform_indices = @transform_2, window_bounds = array<i64: 1, 256>}, {pipeline_mode = #tpu.pipeline_mode<synchronous>, transform_indices = @transform_3, window_bounds = array<i64: 256, 256>}, {pipeline_mode = #tpu.pipeline_mode<synchronous>, transform_indices = @transform_4, window_bounds = array<i64: 1, 256>}, {pipeline_mode = #tpu.pipeline_mode<synchronous>, transform_indices = @transform_5, window_bounds = array<i64: 256, 512>}, {pipeline_mode = #tpu.pipeline_mode<synchronous>, transform_indices = @transform_6, window_bounds = array<i64: 1, 512>}, {pipeline_mode = #tpu.pipeline_mode<synchronous>, transform_indices = @transform_7, window_bounds = array<i64: 512, 128>}, {pipeline_mode = #tpu.pipeline_mode<synchronous>, transform_indices = @transform_8, window_bounds = array<i64: 1, 128>}, {transform_indices = @transform_9, window_bounds = array<i64: 16, 128>}]} {
    %c0 = arith.constant 0 : index
    %c0_0 = arith.constant 0 : index
    %0 = vector.load %arg1[%c0, %c0_0] : memref<16x784xf32, #tpu.memory_space<vmem>>, vector<16x784xf32>
    %1 = arith.truncf %0 : vector<16x784xf32> to vector<16x784xbf16>
    %c0_1 = arith.constant 0 : index
    %c0_2 = arith.constant 0 : index
    %2 = vector.load %arg2[%c0_1, %c0_2] : memref<784x256xbf16, #tpu.memory_space<vmem>>, vector<784x256xbf16>
    %cst = arith.constant dense<0.000000e+00> : vector<16x256xf32>
    %3 = tpu.matmul %1, %2, %cst {dimension_numbers = #tpu.dot_dimension_numbers<[1], [0], [0], [1], [0, 0, 1, 1], [], []>} : vector<16x784xbf16>, vector<784x256xbf16>, vector<16x256xf32> -> vector<16x256xf32>
    %c0_3 = arith.constant 0 : index
    %c0_4 = arith.constant 0 : index
    %4 = vector.load %arg3[%c0_3, %c0_4] : memref<1x256xf32, #tpu.memory_space<vmem>>, vector<1x256xf32>
    %5 = vector.broadcast %4 : vector<1x256xf32> to vector<16x256xf32>
    %6 = arith.addf %3, %5 : vector<16x256xf32>
    %cst_5 = arith.constant 0.000000e+00 : f32
    %7 = vector.broadcast %cst_5 : f32 to vector<16x256xf32>
    %8 = arith.maximumf %6, %7 : vector<16x256xf32>
    %9 = arith.truncf %8 : vector<16x256xf32> to vector<16x256xbf16>
    %c0_6 = arith.constant 0 : index
    %c0_7 = arith.constant 0 : index
    %10 = vector.load %arg4[%c0_6, %c0_7] : memref<256x256xbf16, #tpu.memory_space<vmem>>, vector<256x256xbf16>
    %cst_8 = arith.constant dense<0.000000e+00> : vector<16x256xf32>
    %11 = tpu.matmul %9, %10, %cst_8 {dimension_numbers = #tpu.dot_dimension_numbers<[1], [0], [0], [1], [0, 0, 1, 1], [], []>} : vector<16x256xbf16>, vector<256x256xbf16>, vector<16x256xf32> -> vector<16x256xf32>
    %c0_9 = arith.constant 0 : index
    %c0_10 = arith.constant 0 : index
    %12 = vector.load %arg5[%c0_9, %c0_10] : memref<1x256xf32, #tpu.memory_space<vmem>>, vector<1x256xf32>
    %13 = vector.broadcast %12 : vector<1x256xf32> to vector<16x256xf32>
    %14 = arith.addf %11, %13 : vector<16x256xf32>
    %cst_11 = arith.constant 0.000000e+00 : f32
    %15 = vector.broadcast %cst_11 : f32 to vector<16x256xf32>
    %16 = arith.maximumf %14, %15 : vector<16x256xf32>
    %17 = arith.truncf %16 : vector<16x256xf32> to vector<16x256xbf16>
    %c0_12 = arith.constant 0 : index
    %c0_13 = arith.constant 0 : index
    %18 = vector.load %arg6[%c0_12, %c0_13] : memref<256x512xbf16, #tpu.memory_space<vmem>>, vector<256x512xbf16>
    %cst_14 = arith.constant dense<0.000000e+00> : vector<16x512xf32>
    %19 = tpu.matmul %17, %18, %cst_14 {dimension_numbers = #tpu.dot_dimension_numbers<[1], [0], [0], [1], [0, 0, 1, 1], [], []>} : vector<16x256xbf16>, vector<256x512xbf16>, vector<16x512xf32> -> vector<16x512xf32>
    %c0_15 = arith.constant 0 : index
    %c0_16 = arith.constant 0 : index
    %20 = vector.load %arg7[%c0_15, %c0_16] : memref<1x512xf32, #tpu.memory_space<vmem>>, vector<1x512xf32>
    %21 = vector.broadcast %20 : vector<1x512xf32> to vector<16x512xf32>
    %22 = arith.addf %19, %21 : vector<16x512xf32>
    %cst_17 = arith.constant 0.000000e+00 : f32
    %23 = vector.broadcast %cst_17 : f32 to vector<16x512xf32>
    %24 = arith.maximumf %22, %23 : vector<16x512xf32>
    %25 = arith.truncf %24 : vector<16x512xf32> to vector<16x512xbf16>
    %c0_18 = arith.constant 0 : index
    %c0_19 = arith.constant 0 : index
    %26 = vector.load %arg8[%c0_18, %c0_19] : memref<512x128xbf16, #tpu.memory_space<vmem>>, vector<512x128xbf16>
    %cst_20 = arith.constant dense<0.000000e+00> : vector<16x128xf32>
    %27 = tpu.matmul %25, %26, %cst_20 {dimension_numbers = #tpu.dot_dimension_numbers<[1], [0], [0], [1], [0, 0, 1, 1], [], []>} : vector<16x512xbf16>, vector<512x128xbf16>, vector<16x128xf32> -> vector<16x128xf32>
    %c0_21 = arith.constant 0 : index
    %c0_22 = arith.constant 0 : index
    %28 = vector.load %arg9[%c0_21, %c0_22] : memref<1x128xf32, #tpu.memory_space<vmem>>, vector<1x128xf32>
    %29 = vector.broadcast %28 : vector<1x128xf32> to vector<16x128xf32>
    %30 = arith.addf %27, %29 : vector<16x128xf32>
    %cst_23 = arith.constant dense<0xFF800000> : vector<16xf32>
    %31 = vector.multi_reduction <maximumf>, %30, %cst_23 [1] : vector<16x128xf32> to vector<16xf32>
    %32 = vector.shape_cast %31 : vector<16xf32> to vector<16x1xf32>
    %33 = vector.broadcast %32 : vector<16x1xf32> to vector<16x128xf32>
    %34 = arith.subf %30, %33 : vector<16x128xf32>
    %35 = math.exp %34 : vector<16x128xf32>
    %cst_24 = arith.constant dense<0.000000e+00> : vector<16xf32>
    %36 = vector.multi_reduction <add>, %35, %cst_24 [1] : vector<16x128xf32> to vector<16xf32>
    %37 = vector.shape_cast %36 : vector<16xf32> to vector<16x1xf32>
    %38 = math.log %37 : vector<16x1xf32>
    %39 = vector.broadcast %38 : vector<16x1xf32> to vector<16x128xf32>
    %40 = arith.subf %34, %39 : vector<16x128xf32>
    %c0_25 = arith.constant 0 : index
    %c0_26 = arith.constant 0 : index
    %41 = vector.load %arg10[%c0_25, %c0_26] : memref<16x128xf32, #tpu.memory_space<vmem>>, vector<16x128xf32>
    tpu.vector_store %arg10[%c0_25, %c0_26], %40 {strides = array<i32>} : memref<16x128xf32, #tpu.memory_space<vmem>>, vector<16x128xf32>,
    return
  }
  func.func @transform_0(%arg0: i32) -> (i32, i32) {
    %c0_i32 = arith.constant 0 : i32
    %c0_i32_0 = arith.constant 0 : i32
    return %arg0, %c0_i32 : i32, i32
  }
  func.func @transform_1(%arg0: i32) -> (i32, i32) {
    %c0_i32 = arith.constant 0 : i32
    %c0_i32_0 = arith.constant 0 : i32
    %c0_i32_1 = arith.constant 0 : i32
    return %c0_i32, %c0_i32_0 : i32, i32
  }
  func.func @transform_2(%arg0: i32) -> (i32, i32) {
    %c0_i32 = arith.constant 0 : i32
    %c0_i32_0 = arith.constant 0 : i32
    %c0_i32_1 = arith.constant 0 : i32
    return %c0_i32, %c0_i32_0 : i32, i32
  }
  func.func @transform_3(%arg0: i32) -> (i32, i32) {
    %c0_i32 = arith.constant 0 : i32
    %c0_i32_0 = arith.constant 0 : i32
    %c0_i32_1 = arith.constant 0 : i32
    return %c0_i32, %c0_i32_0 : i32, i32
  }
  func.func @transform_4(%arg0: i32) -> (i32, i32) {
    %c0_i32 = arith.constant 0 : i32
    %c0_i32_0 = arith.constant 0 : i32
    %c0_i32_1 = arith.constant 0 : i32
    return %c0_i32, %c0_i32_0 : i32, i32
  }
  func.func @transform_5(%arg0: i32) -> (i32, i32) {
    %c0_i32 = arith.constant 0 : i32
    %c0_i32_0 = arith.constant 0 : i32
    %c0_i32_1 = arith.constant 0 : i32
    return %c0_i32, %c0_i32_0 : i32, i32
  }
  func.func @transform_6(%arg0: i32) -> (i32, i32) {
    %c0_i32 = arith.constant 0 : i32
    %c0_i32_0 = arith.constant 0 : i32
    %c0_i32_1 = arith.constant 0 : i32
    return %c0_i32, %c0_i32_0 : i32, i32
  }
  func.func @transform_7(%arg0: i32) -> (i32, i32) {
    %c0_i32 = arith.constant 0 : i32
    %c0_i32_0 = arith.constant 0 : i32
    %c0_i32_1 = arith.constant 0 : i32
    return %c0_i32, %c0_i32_0 : i32, i32
  }
  func.func @transform_8(%arg0: i32) -> (i32, i32) {
    %c0_i32 = arith.constant 0 : i32
    %c0_i32_0 = arith.constant 0 : i32
    %c0_i32_1 = arith.constant 0 : i32
    return %c0_i32, %c0_i32_0 : i32, i32
  }
  func.func @transform_9(%arg0: i32) -> (i32, i32) {
    %c0_i32 = arith.constant 0 : i32
    %c0_i32_0 = arith.constant 0 : i32
    return %arg0, %c0_i32 : i32, i32
  }
}

</mosaic_0001>

<llo_original>
// kernel: tpu_custom_call.1
$region0: #{tpu_custom_call.1}
  #allocation0 [shape = 'u32[]', space=smem, size = 0x4, offset = 0x4, fixed_abs, tag = 'smem constant byte address 0x4 - core index']
  #allocation1 [shape = 'u32[144,128]{1,0:T(1,128)}', space=vmem, size = 0x12000, scoped, tag = 'internal scratch']
  %s0 = inlined_call_operand.hbm [shape: f32[16,784], index: 0, kind: input, shape index: {}]
  %s1 = inlined_call_operand.hbm [shape: bf16[784,256], index: 1, kind: input, shape index: {}]
  %s2 = inlined_call_operand.vmem [shape: f32[1,256], index: 2, kind: input, shape index: {}]
  %s3 = inlined_call_operand.hbm [shape: bf16[256,256], index: 3, kind: input, shape index: {}]
  %s4 = inlined_call_operand.vmem [shape: f32[1,256], index: 4, kind: input, shape index: {}]
  %s5 = inlined_call_operand.hbm [shape: bf16[256,512], index: 5, kind: input, shape index: {}]
  %s6 = inlined_call_operand.vmem [shape: f32[1,512], index: 6, kind: input, shape index: {}]
  %s7 = inlined_call_operand.hbm [shape: bf16[512,128], index: 7, kind: input, shape index: {}]
  %s8 = inlined_call_operand.vmem [shape: f32[1,128], index: 8, kind: input, shape index: {}]
  %s9 = inlined_call_operand.hbm [shape: f32[16,128], index: 9, kind: output, shape index: {}]
  %s10 = sld [smem:[#allocation0]]
  $region66: #{tpu_custom_call.1} parent=0
    _
  %s12 = ssub.s32 1, %s10
  %s13 = scalar_select 0, %s12, %s10
  $region1: #{tpu_custom_call.1} parent=0
    #allocation2 [shape = 'u8[57344]{0}', space=vmem, size = 0xe000, scoped, tag = 'input window, operand 0, single buffered']
    #allocation3 [shape = 's32[1]{0}', space=sflag, size = 0x4, scoped, tag = 'scoped memory for tpu_custom_call.1']
    #allocation4 [shape = 's32[1]{0}', space=sflag, size = 0x4, scoped, tag = 'scoped memory for tpu_custom_call.1']
    #allocation5 [shape = 'u8[401408]{0}', space=vmem, size = 0x62000, scoped, tag = 'input window, operand 1, single buffered']
    #allocation6 [shape = 's32[1]{0}', space=sflag, size = 0x4, scoped, tag = 'scoped memory for tpu_custom_call.1']
    #allocation7 [shape = 'u8[131072]{0}', space=vmem, size = 0x20000, scoped, tag = 'input window, operand 3, single buffered']
    #allocation8 [shape = 'u8[262144]{0}', space=vmem, size = 0x40000, scoped, tag = 'input window, operand 5, single buffered']
    #allocation9 [shape = 's32[1]{0}', space=sflag, size = 0x4, scoped, tag = 'scoped memory for tpu_custom_call.1']
    #allocation10 [shape = 'u8[131072]{0}', space=vmem, size = 0x20000, scoped, tag = 'input window, operand 7, single buffered']
    #allocation11 [shape = 'u8[8192]{0}', space=vmem, size = 0x2000, scoped, tag = 'output window, operand 0, single buffered']
    %14 = vsyncpa [#allocation3], 0
    %15 = vsyncpa [#allocation6], 0
    %16 = vsyncpa [#allocation9], 0
    %17 = vsyncpa [#allocation4], 0
    // Predicated region
    $region2: #{tpu_custom_call.1} parent=1 // pred_check
      _
    $region3: #{tpu_custom_call.1} parent=1 // pred_check_branch
      %19 = sbr.rel (0) target = $region5
    $region4: #{tpu_custom_call.1} parent=1 // pred_region
      %s21 = ssub.s32 1792, 1792
      %22 = vsyncadd [#allocation3], %s21
      %s23 = sshll.u32 [#allocation2], 4
      %s24 = int_to_ptr.vmem [resolvable:$true] %s23
      %29 = dma.hbm_to_vmem [thread:$0]  %s0, 1792, %s24, [#allocation3], 896, 896, 56
    $region5: #{tpu_custom_call.1} parent=1 // pred_fallthru
      _
    // Predicated region
    $region6: #{tpu_custom_call.1} parent=1 // pred_check
      _
    $region7: #{tpu_custom_call.1} parent=1 // pred_check_branch
      %31 = sbr.rel (0) target = $region9
    $region8: #{tpu_custom_call.1} parent=1 // pred_region
      %s33 = ssub.s32 12544, 12544
      %34 = vsyncadd [#allocation6], %s33
      %s35 = sshll.u32 [#allocation5], 4
      %s36 = int_to_ptr.vmem [resolvable:$true] %s35
      %41 = dma.hbm_to_vmem [thread:$0]  %s1, 12544, %s36, [#allocation6], 128, 128, 8
    $region9: #{tpu_custom_call.1} parent=1 // pred_fallthru
      _
    // Predicated region
    $region10: #{tpu_custom_call.1} parent=1 // pred_check
      _
    $region11: #{tpu_custom_call.1} parent=1 // pred_check_branch
      %43 = sbr.rel (0) target = $region13
    $region12: #{tpu_custom_call.1} parent=1 // pred_region
      _
    $region13: #{tpu_custom_call.1} parent=1 // pred_fallthru
      _
    // Predicated region
    $region14: #{tpu_custom_call.1} parent=1 // pred_check
      _
    $region15: #{tpu_custom_call.1} parent=1 // pred_check_branch
      %45 = sbr.rel (0) target = $region17
    $region16: #{tpu_custom_call.1} parent=1 // pred_region
      %s47 = ssub.s32 4096, 4096
      %48 = vsyncadd [#allocation6], %s47
      %s49 = sshll.u32 [#allocation7], 4
      %s50 = int_to_ptr.vmem [resolvable:$true] %s49
      %55 = dma.hbm_to_vmem [thread:$0]  %s3, 4096, %s50, [#allocation6], 128, 128, 8
    $region17: #{tpu_custom_call.1} parent=1 // pred_fallthru
      _
    // Predicated region
    $region18: #{tpu_custom_call.1} parent=1 // pred_check
      _
    $region19: #{tpu_custom_call.1} parent=1 // pred_check_branch
      %57 = sbr.rel (0) target = $region21
    $region20: #{tpu_custom_call.1} parent=1 // pred_region
      _
    $region21: #{tpu_custom_call.1} parent=1 // pred_fallthru
      _
    // Predicated region
    $region22: #{tpu_custom_call.1} parent=1 // pred_check
      _
    $region23: #{tpu_custom_call.1} parent=1 // pred_check_branch
      %59 = sbr.rel (0) target = $region25
    $region24: #{tpu_custom_call.1} parent=1 // pred_region
      %s61 = ssub.s32 8192, 8192
      %62 = vsyncadd [#allocation9], %s61
      %s63 = sshll.u32 [#allocation8], 4
      %s64 = int_to_ptr.vmem [resolvable:$true] %s63
      %69 = dma.hbm_to_vmem [thread:$0]  %s5, 8192, %s64, [#allocation9], 256, 256, 16
    $region25: #{tpu_custom_call.1} parent=1 // pred_fallthru
      _
    // Predicated region
    $region26: #{tpu_custom_call.1} parent=1 // pred_check
      _
    $region27: #{tpu_custom_call.1} parent=1 // pred_check_branch
      %71 = sbr.rel (0) target = $region29
    $region28: #{tpu_custom_call.1} parent=1 // pred_region
      _
    $region29: #{tpu_custom_call.1} parent=1 // pred_fallthru
      _
    // Predicated region
    $region30: #{tpu_custom_call.1} parent=1 // pred_check
      _
    $region31: #{tpu_custom_call.1} parent=1 // pred_check_branch
      %73 = sbr.rel (0) target = $region33
    $region32: #{tpu_custom_call.1} parent=1 // pred_region
      %s75 = ssub.s32 4096, 4096
      %76 = vsyncadd [#allocation9], %s75
      %s77 = sshll.u32 [#allocation10], 4
      %s78 = int_to_ptr.vmem [resolvable:$true] %s77
      %83 = dma.hbm_to_vmem [thread:$0]  %s7, 4096, %s78, [#allocation9], 64, 64, 4
    $region33: #{tpu_custom_call.1} parent=1 // pred_fallthru
      _
    // Predicated region
    $region34: #{tpu_custom_call.1} parent=1 // pred_check
      _
    $region35: #{tpu_custom_call.1} parent=1 // pred_check_branch
      %85 = sbr.rel (0) target = $region37
    $region36: #{tpu_custom_call.1} parent=1 // pred_region
      _
    $region37: #{tpu_custom_call.1} parent=1 // pred_fallthru
      _
    // Predicated region
    $region38: #{tpu_custom_call.1} parent=1 // pred_check
      _
    $region39: #{tpu_custom_call.1} parent=1 // pred_check_branch
      %87 = sbr.rel (0) target = $region41
    $region40: #{tpu_custom_call.1} parent=1 // pred_region
      %88 = dma.done [#allocation3], 1792
    $region41: #{tpu_custom_call.1} parent=1 // pred_fallthru
      _
    // Predicated region
    $region42: #{tpu_custom_call.1} parent=1 // pred_check
      _
    $region43: #{tpu_custom_call.1} parent=1 // pred_check_branch
      %90 = sbr.rel (0) target = $region45
    $region44: #{tpu_custom_call.1} parent=1 // pred_region
      %91 = dma.done [#allocation6], 12544
    $region45: #{tpu_custom_call.1} parent=1 // pred_fallthru
      _
    // Predicated region
    $region46: #{tpu_custom_call.1} parent=1 // pred_check
      _
    $region47: #{tpu_custom_call.1} parent=1 // pred_check_branch
      %93 = sbr.rel (0) target = $region49
    $region48: #{tpu_custom_call.1} parent=1 // pred_region
      %94 = dma.done [#allocation6], 4096
    $region49: #{tpu_custom_call.1} parent=1 // pred_fallthru
      _
    // Predicated region
    $region50: #{tpu_custom_call.1} parent=1 // pred_check
      _
    $region51: #{tpu_custom_call.1} parent=1 // pred_check_branch
      %96 = sbr.rel (0) target = $region53
    $region52: #{tpu_custom_call.1} parent=1 // pred_region
      %97 = dma.done [#allocation9], 8192
    $region53: #{tpu_custom_call.1} parent=1 // pred_fallthru
      _
    // Predicated region
    $region54: #{tpu_custom_call.1} parent=1 // pred_check
      _
    $region55: #{tpu_custom_call.1} parent=1 // pred_check_branch
      %99 = sbr.rel (0) target = $region57
    $region56: #{tpu_custom_call.1} parent=1 // pred_region
      %100 = dma.done [#allocation9], 4096
    $region57: #{tpu_custom_call.1} parent=1 // pred_fallthru
      _
    %v102 = vld [vmem:[#allocation2] sm:$0xff]
    %v103 = vld [vmem:[#allocation2 + $0x8] sm:$0xff]
    %v104 = vld [vmem:[#allocation2 + $0x10] sm:$0xff]
    %v105 = vld [vmem:[#allocation2 + $0x18] sm:$0xff]
    %v106 = vld [vmem:[#allocation2 + $0x20] sm:$0xff]
    %v107 = vld [vmem:[#allocation2 + $0x28] sm:$0xff]
    %v108 = vld [vmem:[#allocation2 + $0x30] sm:$0xff]
    %v109 = vld [vmem:[#allocation2 + $0x38] sm:$0xff]
    %v110 = vld [vmem:[#allocation2 + $0x40] sm:$0xff]
    %v111 = vld [vmem:[#allocation2 + $0x48] sm:$0xff]
    %v112 = vld [vmem:[#allocation2 + $0x50] sm:$0xff]
    %v113 = vld [vmem:[#allocation2 + $0x58] sm:$0xff]
    %v114 = vld [vmem:[#allocation2 + $0x60] sm:$0xff]
    %v115 = vld [vmem:[#allocation2 + $0x68] sm:$0xff]
    %v116 = vpack.c.bf16 %v109, %v102
    %v117 = vpack.c.bf16 %v110, %v103
    %v118 = vpack.c.bf16 %v111, %v104
    %v119 = vpack.c.bf16 %v112, %v105
    %v120 = vpack.c.bf16 %v113, %v106
    %v121 = vpack.c.bf16 %v114, %v107
    %v122 = vpack.c.bf16 %v115, %v108
    %v123 = vld [vmem:[#allocation5] sm:$0xff]
    %v124 = vld [vmem:[#allocation5 + $0x8] sm:$0xff]
    %v125 = vld [vmem:[#allocation5 + $0x10] sm:$0xff]
    %v126 = vld [vmem:[#allocation5 + $0x18] sm:$0xff]
    %v127 = vld [vmem:[#allocation5 + $0x20] sm:$0xff]
    %v128 = vld [vmem:[#allocation5 + $0x28] sm:$0xff]
    %v129 = vld [vmem:[#allocation5 + $0x30] sm:$0xff]
    %v130 = vld [vmem:[#allocation5 + $0x38] sm:$0xff]
    %v131 = vld [vmem:[#allocation5 + $0x40] sm:$0xff]
    %v132 = vld [vmem:[#allocation5 + $0x48] sm:$0xff]
    %v133 = vld [vmem:[#allocation5 + $0x50] sm:$0xff]
    %v134 = vld [vmem:[#allocation5 + $0x58] sm:$0xff]
    %v135 = vld [vmem:[#allocation5 + $0x60] sm:$0xff]
    %v136 = vld [vmem:[#allocation5 + $0x68] sm:$0xff]
    %v137 = vld [vmem:[#allocation5 + $0x70] sm:$0xff]
    %v138 = vld [vmem:[#allocation5 + $0x78] sm:$0xff]
    %v139 = vld [vmem:[#allocation5 + $0x80] sm:$0xff]
    %v140 = vld [vmem:[#allocation5 + $0x88] sm:$0xff]
    %v141 = vld [vmem:[#allocation5 + $0x90] sm:$0xff]
    %v142 = vld [vmem:[#allocation5 + $0x98] sm:$0xff]
    %v143 = vld [vmem:[#allocation5 + $0xa0] sm:$0xff]
    %v144 = vld [vmem:[#allocation5 + $0xa8] sm:$0xff]
    %v145 = vld [vmem:[#allocation5 + $0xb0] sm:$0xff]
    %v146 = vld [vmem:[#allocation5 + $0xb8] sm:$0xff]
    %v147 = vld [vmem:[#allocation5 + $0xc0] sm:$0xff]
    %v148 = vld [vmem:[#allocation5 + $0xc8] sm:$0xff]
    %v149 = vld [vmem:[#allocation5 + $0xd0] sm:$0xff]
    %v150 = vld [vmem:[#allocation5 + $0xd8] sm:$0xff]
    %v151 = vld [vmem:[#allocation5 + $0xe0] sm:$0xff]
    %v152 = vld [vmem:[#allocation5 + $0xe8] sm:$0xff]
    %v153 = vld [vmem:[#allocation5 + $0xf0] sm:$0xff]
    %v154 = vld [vmem:[#allocation5 + $0xf8] sm:$0xff]
    %v155 = vld [vmem:[#allocation5 + $0x100] sm:$0xff]
    %v156 = vld [vmem:[#allocation5 + $0x108] sm:$0xff]
    %v157 = vld [vmem:[#allocation5 + $0x110] sm:$0xff]
    %v158 = vld [vmem:[#allocation5 + $0x118] sm:$0xff]
    %v159 = vld [vmem:[#allocation5 + $0x120] sm:$0xff]
    %v160 = vld [vmem:[#allocation5 + $0x128] sm:$0xff]
    %v161 = vld [vmem:[#allocation5 + $0x130] sm:$0xff]
    %v162 = vld [vmem:[#allocation5 + $0x138] sm:$0xff]
    %v163 = vld [vmem:[#allocation5 + $0x140] sm:$0xff]
    %v164 = vld [vmem:[#allocation5 + $0x148] sm:$0xff]
    %v165 = vld [vmem:[#allocation5 + $0x150] sm:$0xff]
    %v166 = vld [vmem:[#allocation5 + $0x158] sm:$0xff]
    %v167 = vld [vmem:[#allocation5 + $0x160] sm:$0xff]
    %v168 = vld [vmem:[#allocation5 + $0x168] sm:$0xff]
    %v169 = vld [vmem:[#allocation5 + $0x170] sm:$0xff]
    %v170 = vld [vmem:[#allocation5 + $0x178] sm:$0xff]
    %v171 = vld [vmem:[#allocation5 + $0x180] sm:$0xff]
    %v172 = vld [vmem:[#allocation5 + $0x188] sm:$0xff]
    %v173 = vld [vmem:[#allocation5 + $0x190] sm:$0xff]
    %v174 = vld [vmem:[#allocation5 + $0x198] sm:$0xff]
    %v175 = vld [vmem:[#allocation5 + $0x1a0] sm:$0xff]
    %v176 = vld [vmem:[#allocation5 + $0x1a8] sm:$0xff]
    %v177 = vld [vmem:[#allocation5 + $0x1b0] sm:$0xff]
    %v178 = vld [vmem:[#allocation5 + $0x1b8] sm:$0xff]
    %v179 = vld [vmem:[#allocation5 + $0x1c0] sm:$0xff]
    %v180 = vld [vmem:[#allocation5 + $0x1c8] sm:$0xff]
    %v181 = vld [vmem:[#allocation5 + $0x1d0] sm:$0xff]
    %v182 = vld [vmem:[#allocation5 + $0x1d8] sm:$0xff]
    %v183 = vld [vmem:[#allocation5 + $0x1e0] sm:$0xff]
    %v184 = vld [vmem:[#allocation5 + $0x1e8] sm:$0xff]
    %v185 = vld [vmem:[#allocation5 + $0x1f0] sm:$0xff]
    %v186 = vld [vmem:[#allocation5 + $0x1f8] sm:$0xff]
    %v187 = vld [vmem:[#allocation5 + $0x200] sm:$0xff]
    %v188 = vld [vmem:[#allocation5 + $0x208] sm:$0xff]
    %v189 = vld [vmem:[#allocation5 + $0x210] sm:$0xff]
    %v190 = vld [vmem:[#allocation5 + $0x218] sm:$0xff]
    %v191 = vld [vmem:[#allocation5 + $0x220] sm:$0xff]
    %v192 = vld [vmem:[#allocation5 + $0x228] sm:$0xff]
    %v193 = vld [vmem:[#allocation5 + $0x230] sm:$0xff]
    %v194 = vld [vmem:[#allocation5 + $0x238] sm:$0xff]
    %v195 = vld [vmem:[#allocation5 + $0x240] sm:$0xff]
    %v196 = vld [vmem:[#allocation5 + $0x248] sm:$0xff]
    %v197 = vld [vmem:[#allocation5 + $0x250] sm:$0xff]
    %v198 = vld [vmem:[#allocation5 + $0x258] sm:$0xff]
    %v199 = vld [vmem:[#allocation5 + $0x260] sm:$0xff]
    %v200 = vld [vmem:[#allocation5 + $0x268] sm:$0xff]
    %v201 = vld [vmem:[#allocation5 + $0x270] sm:$0xff]
    %v202 = vld [vmem:[#allocation5 + $0x278] sm:$0xff]
    %v203 = vld [vmem:[#allocation5 + $0x280] sm:$0xff]
    %v204 = vld [vmem:[#allocation5 + $0x288] sm:$0xff]
    %v205 = vld [vmem:[#allocation5 + $0x290] sm:$0xff]
    %v206 = vld [vmem:[#allocation5 + $0x298] sm:$0xff]
    %v207 = vld [vmem:[#allocation5 + $0x2a0] sm:$0xff]
    %v208 = vld [vmem:[#allocation5 + $0x2a8] sm:$0xff]
    %v209 = vld [vmem:[#allocation5 + $0x2b0] sm:$0xff]
    %v210 = vld [vmem:[#allocation5 + $0x2b8] sm:$0xff]
    %v211 = vld [vmem:[#allocation5 + $0x2c0] sm:$0xff]
    %v212 = vld [vmem:[#allocation5 + $0x2c8] sm:$0xff]
    %v213 = vld [vmem:[#allocation5 + $0x2d0] sm:$0xff]
    %v214 = vld [vmem:[#allocation5 + $0x2d8] sm:$0xff]
    %v215 = vld [vmem:[#allocation5 + $0x2e0] sm:$0xff]
    %v216 = vld [vmem:[#allocation5 + $0x2e8] sm:$0xff]
    %v217 = vld [vmem:[#allocation5 + $0x2f0] sm:$0xff]
    %v218 = vld [vmem:[#allocation5 + $0x2f8] sm:$0xff]
    %v219 = vld [vmem:[#allocation5 + $0x300] sm:$0xff]
    %v220 = vld [vmem:[#allocation5 + $0x308] sm:$0xff]
    %v221 = vld [vmem:[%s2] sm:$0x3]
    %v223 = vlaneseq
    %v224 = vshrl.u32 %v223, 7
    %v225 = vsub.s32 0, %v224
    %v226 = vrot.slane %v221, %v225
    %v227 = vlaneseq
    %v228 = vshrl.u32 %v227, 7
    %v229 = vsub.s32 1, %v228
    %v230 = vrot.slane %v221, %v229
    %v331 = vunpack.c.l.b16 %v123
    %v332 = vunpack.c.h.b16 %v123
    %v333 = vunpack.c.l.b16 %v124
    %v334 = vunpack.c.h.b16 %v124
    %v335 = vunpack.c.l.b16 %v125
    %v336 = vunpack.c.h.b16 %v125
    %v337 = vunpack.c.l.b16 %v126
    %v338 = vunpack.c.h.b16 %v126
    %v339 = vunpack.c.l.b16 %v127
    %v340 = vunpack.c.h.b16 %v127
    %v341 = vunpack.c.l.b16 %v128
    %v342 = vunpack.c.h.b16 %v128
    %v343 = vunpack.c.l.b16 %v129
    %v344 = vunpack.c.h.b16 %v129
    %v345 = vunpack.c.l.b16 %v130
    %v346 = vunpack.c.h.b16 %v130
    %v347 = vunpack.c.l.b16 %v131
    %v348 = vunpack.c.h.b16 %v131
    %v349 = vunpack.c.l.b16 %v132
    %v350 = vunpack.c.h.b16 %v132
    %v351 = vunpack.c.l.b16 %v133
    %v352 = vunpack.c.h.b16 %v133
    %v353 = vunpack.c.l.b16 %v134
    %v354 = vunpack.c.h.b16 %v134
    %v355 = vunpack.c.l.b16 %v135
    %v356 = vunpack.c.h.b16 %v135
    %v357 = vunpack.c.l.b16 %v136
    %v358 = vunpack.c.h.b16 %v136
    %v359 = vunpack.c.l.b16 %v137
    %v360 = vunpack.c.h.b16 %v137
    %v361 = vunpack.c.l.b16 %v138
    %v362 = vunpack.c.h.b16 %v138
    %v363 = vunpack.c.l.b16 %v139
    %v364 = vunpack.c.h.b16 %v139
    %v365 = vunpack.c.l.b16 %v140
    %v366 = vunpack.c.h.b16 %v140
    %v367 = vunpack.c.l.b16 %v141
    %v368 = vunpack.c.h.b16 %v141
    %v369 = vunpack.c.l.b16 %v142
    %v370 = vunpack.c.h.b16 %v142
    %v371 = vunpack.c.l.b16 %v143
    %v372 = vunpack.c.h.b16 %v143
    %v373 = vunpack.c.l.b16 %v144
    %v374 = vunpack.c.h.b16 %v144
    %v375 = vunpack.c.l.b16 %v145
    %v376 = vunpack.c.h.b16 %v145
    %v377 = vunpack.c.l.b16 %v146
    %v378 = vunpack.c.h.b16 %v146
    %v379 = vunpack.c.l.b16 %v147
    %v380 = vunpack.c.h.b16 %v147
    %v381 = vunpack.c.l.b16 %v148
    %v382 = vunpack.c.h.b16 %v148
    %v383 = vunpack.c.l.b16 %v149
    %v384 = vunpack.c.h.b16 %v149
    %v385 = vunpack.c.l.b16 %v150
    %v386 = vunpack.c.h.b16 %v150
    %v387 = vunpack.c.l.b16 %v151
    %v388 = vunpack.c.h.b16 %v151
    %v389 = vunpack.c.l.b16 %v152
    %v390 = vunpack.c.h.b16 %v152
    %v391 = vunpack.c.l.b16 %v153
    %v392 = vunpack.c.h.b16 %v153
    %v393 = vunpack.c.l.b16 %v154
    %v394 = vunpack.c.h.b16 %v154
    %v395 = vunpack.c.l.b16 %v155
    %v396 = vunpack.c.h.b16 %v155
    %v397 = vunpack.c.l.b16 %v156
    %v398 = vunpack.c.h.b16 %v156
    %v399 = vunpack.c.l.b16 %v157
    %v400 = vunpack.c.h.b16 %v157
    %v401 = vunpack.c.l.b16 %v158
    %v402 = vunpack.c.h.b16 %v158
    %v403 = vunpack.c.l.b16 %v159
    %v404 = vunpack.c.h.b16 %v159
    %v405 = vunpack.c.l.b16 %v160
    %v406 = vunpack.c.h.b16 %v160
    %v407 = vunpack.c.l.b16 %v161
    %v408 = vunpack.c.h.b16 %v161
    %v409 = vunpack.c.l.b16 %v162
    %v410 = vunpack.c.h.b16 %v162
    %v411 = vunpack.c.l.b16 %v163
    %v412 = vunpack.c.h.b16 %v163
    %v413 = vunpack.c.l.b16 %v164
    %v414 = vunpack.c.h.b16 %v164
    %v415 = vunpack.c.l.b16 %v165
    %v416 = vunpack.c.h.b16 %v165
    %v417 = vunpack.c.l.b16 %v166
    %v418 = vunpack.c.h.b16 %v166
    %v419 = vunpack.c.l.b16 %v167
    %v420 = vunpack.c.h.b16 %v167
    %v421 = vunpack.c.l.b16 %v168
    %v422 = vunpack.c.h.b16 %v168
    %v423 = vunpack.c.l.b16 %v169
    %v424 = vunpack.c.h.b16 %v169
    %v425 = vunpack.c.l.b16 %v170
    %v426 = vunpack.c.h.b16 %v170
    %v427 = vunpack.c.l.b16 %v171
    %v428 = vunpack.c.h.b16 %v171
    %v429 = vunpack.c.l.b16 %v172
    %v430 = vunpack.c.h.b16 %v172
    %v431 = vunpack.c.l.b16 %v173
    %v432 = vunpack.c.h.b16 %v173
    %v433 = vunpack.c.l.b16 %v174
    %v434 = vunpack.c.h.b16 %v174
    %v435 = vunpack.c.l.b16 %v175
    %v436 = vunpack.c.h.b16 %v175
    %v437 = vunpack.c.l.b16 %v176
    %v438 = vunpack.c.h.b16 %v176
    %v439 = vunpack.c.l.b16 %v177
    %v440 = vunpack.c.h.b16 %v177
    %v441 = vunpack.c.l.b16 %v178
    %v442 = vunpack.c.h.b16 %v178
    %v443 = vunpack.c.l.b16 %v179
    %v444 = vunpack.c.h.b16 %v179
    %v445 = vunpack.c.l.b16 %v180
    %v446 = vunpack.c.h.b16 %v180
    %v447 = vunpack.c.l.b16 %v181
    %v448 = vunpack.c.h.b16 %v181
    %v449 = vunpack.c.l.b16 %v182
    %v450 = vunpack.c.h.b16 %v182
    %v451 = vunpack.c.l.b16 %v183
    %v452 = vunpack.c.h.b16 %v183
    %v453 = vunpack.c.l.b16 %v184
    %v454 = vunpack.c.h.b16 %v184
    %v455 = vunpack.c.l.b16 %v185
    %v456 = vunpack.c.h.b16 %v185
    %v457 = vunpack.c.l.b16 %v186
    %v458 = vunpack.c.h.b16 %v186
    %v459 = vunpack.c.l.b16 %v187
    %v460 = vunpack.c.h.b16 %v187
    %v461 = vunpack.c.l.b16 %v188
    %v462 = vunpack.c.h.b16 %v188
    %v463 = vunpack.c.l.b16 %v189
    %v464 = vunpack.c.h.b16 %v189
    %v465 = vunpack.c.l.b16 %v190
    %v466 = vunpack.c.h.b16 %v190
    %v467 = vunpack.c.l.b16 %v191
    %v468 = vunpack.c.h.b16 %v191
    %v469 = vunpack.c.l.b16 %v192
    %v470 = vunpack.c.h.b16 %v192
    %v471 = vunpack.c.l.b16 %v193
    %v472 = vunpack.c.h.b16 %v193
    %v473 = vunpack.c.l.b16 %v194
    %v474 = vunpack.c.h.b16 %v194
    %v475 = vunpack.c.l.b16 %v195
    %v476 = vunpack.c.h.b16 %v195
    %v477 = vunpack.c.l.b16 %v196
    %v478 = vunpack.c.h.b16 %v196
    %v479 = vunpack.c.l.b16 %v197
    %v480 = vunpack.c.h.b16 %v197
    %v481 = vunpack.c.l.b16 %v198
    %v482 = vunpack.c.h.b16 %v198
    %v483 = vunpack.c.l.b16 %v199
    %v484 = vunpack.c.h.b16 %v199
    %v485 = vunpack.c.l.b16 %v200
    %v486 = vunpack.c.h.b16 %v200
    %v487 = vunpack.c.l.b16 %v201
    %v488 = vunpack.c.h.b16 %v201
    %v489 = vunpack.c.l.b16 %v202
    %v490 = vunpack.c.h.b16 %v202
    %v491 = vunpack.c.l.b16 %v203
    %v492 = vunpack.c.h.b16 %v203
    %v493 = vunpack.c.l.b16 %v204
    %v494 = vunpack.c.h.b16 %v204
    %v495 = vunpack.c.l.b16 %v205
    %v496 = vunpack.c.h.b16 %v205
    %v497 = vunpack.c.l.b16 %v206
    %v498 = vunpack.c.h.b16 %v206
    %v499 = vunpack.c.l.b16 %v207
    %v500 = vunpack.c.h.b16 %v207
    %v501 = vunpack.c.l.b16 %v208
    %v502 = vunpack.c.h.b16 %v208
    %v503 = vunpack.c.l.b16 %v209
    %v504 = vunpack.c.h.b16 %v209
    %v505 = vunpack.c.l.b16 %v210
    %v506 = vunpack.c.h.b16 %v210
    %v507 = vunpack.c.l.b16 %v211
    %v508 = vunpack.c.h.b16 %v211
    %v509 = vunpack.c.l.b16 %v212
    %v510 = vunpack.c.h.b16 %v212
    %v511 = vunpack.c.l.b16 %v213
    %v512 = vunpack.c.h.b16 %v213
    %v513 = vunpack.c.l.b16 %v214
    %v514 = vunpack.c.h.b16 %v214
    %v515 = vunpack.c.l.b16 %v215
    %v516 = vunpack.c.h.b16 %v215
    %v517 = vunpack.c.l.b16 %v216
    %v518 = vunpack.c.h.b16 %v216
    %v519 = vunpack.c.l.b16 %v217
    %v520 = vunpack.c.h.b16 %v217
    %v521 = vunpack.c.l.b16 %v218
    %v522 = vunpack.c.h.b16 %v218
    %v523 = vunpack.c.l.b16 %v219
    %v524 = vunpack.c.h.b16 %v219
    %v525 = vunpack.c.l.b16 %v220
    %v526 = vunpack.c.h.b16 %v220
    %v527 = vpack.c.b16 %v333, %v331
    %v528 = vpack.c.b16 %v334, %v332
    %v529 = vpack.c.b16 %v337, %v335
    %v530 = vpack.c.b16 %v338, %v336
    %v531 = vpack.c.b16 %v341, %v339
    %v532 = vpack.c.b16 %v342, %v340
    %v533 = vpack.c.b16 %v345, %v343
    %v534 = vpack.c.b16 %v346, %v344
    %v535 = vpack.c.b16 %v349, %v347
    %v536 = vpack.c.b16 %v350, %v348
    %v537 = vpack.c.b16 %v353, %v351
    %v538 = vpack.c.b16 %v354, %v352
    %v539 = vpack.c.b16 %v357, %v355
    %v540 = vpack.c.b16 %v358, %v356
    %v541 = vpack.c.b16 %v361, %v359
    %v542 = vpack.c.b16 %v362, %v360
    %v543 = vpack.c.b16 %v365, %v363
    %v544 = vpack.c.b16 %v366, %v364
    %v545 = vpack.c.b16 %v369, %v367
    %v546 = vpack.c.b16 %v370, %v368
    %v547 = vpack.c.b16 %v373, %v371
    %v548 = vpack.c.b16 %v374, %v372
    %v549 = vpack.c.b16 %v377, %v375
    %v550 = vpack.c.b16 %v378, %v376
    %v551 = vpack.c.b16 %v381, %v379
    %v552 = vpack.c.b16 %v382, %v380
    %v553 = vpack.c.b16 %v385, %v383
    %v554 = vpack.c.b16 %v386, %v384
    %v555 = vpack.c.b16 %v389, %v387
    %v556 = vpack.c.b16 %v390, %v388
    %v557 = vpack.c.b16 %v393, %v391
    %v558 = vpack.c.b16 %v394, %v392
    %v559 = vpack.c.b16 %v397, %v395
    %v560 = vpack.c.b16 %v398, %v396
    %v561 = vpack.c.b16 %v401, %v399
    %v562 = vpack.c.b16 %v402, %v400
    %v563 = vpack.c.b16 %v405, %v403
    %v564 = vpack.c.b16 %v406, %v404
    %v565 = vpack.c.b16 %v409, %v407
    %v566 = vpack.c.b16 %v410, %v408
    %v567 = vpack.c.b16 %v413, %v411
    %v568 = vpack.c.b16 %v414, %v412
    %v569 = vpack.c.b16 %v417, %v415
    %v570 = vpack.c.b16 %v418, %v416
    %v571 = vpack.c.b16 %v421, %v419
    %v572 = vpack.c.b16 %v422, %v420
    %v573 = vpack.c.b16 %v425, %v423
    %v574 = vpack.c.b16 %v426, %v424
    %v575 = vpack.c.b16 %v429, %v427
    %v576 = vpack.c.b16 %v430, %v428
    %v577 = vpack.c.b16 %v433, %v431
    %v578 = vpack.c.b16 %v434, %v432
    %v579 = vpack.c.b16 %v437, %v435
    %v580 = vpack.c.b16 %v438, %v436
    %v581 = vpack.c.b16 %v441, %v439
    %v582 = vpack.c.b16 %v442, %v440
    %v583 = vpack.c.b16 %v445, %v443
    %v584 = vpack.c.b16 %v446, %v444
    %v585 = vpack.c.b16 %v449, %v447
    %v586 = vpack.c.b16 %v450, %v448
    %v587 = vpack.c.b16 %v453, %v451
    %v588 = vpack.c.b16 %v454, %v452
    %v589 = vpack.c.b16 %v457, %v455
    %v590 = vpack.c.b16 %v458, %v456
    %v591 = vpack.c.b16 %v461, %v459
    %v592 = vpack.c.b16 %v462, %v460
    %v593 = vpack.c.b16 %v465, %v463
    %v594 = vpack.c.b16 %v466, %v464
    %v595 = vpack.c.b16 %v469, %v467
    %v596 = vpack.c.b16 %v470, %v468
    %v597 = vpack.c.b16 %v473, %v471
    %v598 = vpack.c.b16 %v474, %v472
    %v599 = vpack.c.b16 %v477, %v475
    %v600 = vpack.c.b16 %v478, %v476
    %v601 = vpack.c.b16 %v481, %v479
    %v602 = vpack.c.b16 %v482, %v480
    %v603 = vpack.c.b16 %v485, %v483
    %v604 = vpack.c.b16 %v486, %v484
    %v605 = vpack.c.b16 %v489, %v487
    %v606 = vpack.c.b16 %v490, %v488
    %v607 = vpack.c.b16 %v493, %v491
    %v608 = vpack.c.b16 %v494, %v492
    %v609 = vpack.c.b16 %v497, %v495
    %v610 = vpack.c.b16 %v498, %v496
    %v611 = vpack.c.b16 %v501, %v499
    %v612 = vpack.c.b16 %v502, %v500
    %v613 = vpack.c.b16 %v505, %v503
    %v614 = vpack.c.b16 %v506, %v504
    %v615 = vpack.c.b16 %v509, %v507
    %v616 = vpack.c.b16 %v510, %v508
    %v617 = vpack.c.b16 %v513, %v511
    %v618 = vpack.c.b16 %v514, %v512
    %v619 = vpack.c.b16 %v517, %v515
    %v620 = vpack.c.b16 %v518, %v516
    %v621 = vpack.c.b16 %v521, %v519
    %v622 = vpack.c.b16 %v522, %v520
    %v623 = vpack.c.b16 %v525, %v523
    %v624 = vpack.c.b16 %v526, %v524
    %vm723 = vcmask 130048
    %v725 = vsel %vm723, %v122, 0
    %727 = vmatprep.subr.bf16.mxu0 %v528
    %728 = vmatpush1.bf16.msra.mxu0 %v527
    %729 = vmatprep.subr.bf16.mxu0 %v530
    %730 = vmatpush1.bf16.msra.mxu0 %v529
    %731 = vmatprep.subr.bf16.mxu0 %v532
    %732 = vmatpush1.bf16.msra.mxu0 %v531
    %733 = vmatprep.subr.bf16.mxu0 %v534
    %734 = vmatpush1.bf16.msra.mxu0 %v533
    %735 = vmatprep.subr.bf16.mxu0 %v536
    %736 = vmatpush1.bf16.msra.mxu0 %v535
    %737 = vmatprep.subr.bf16.mxu0 %v538
    %738 = vmatpush1.bf16.msra.mxu0 %v537
    %739 = vmatprep.subr.bf16.mxu0 %v540
    %740 = vmatpush1.bf16.msra.mxu0 %v539
    %741 = vmatprep.subr.bf16.mxu0 %v542
    %742 = vmatpush1.bf16.msra.mxu0 %v541
    %743 = vmatprep.subr.bf16.mxu0 %v544
    %744 = vmatpush1.bf16.msra.mxu0 %v543
    %745 = vmatprep.subr.bf16.mxu0 %v546
    %746 = vmatpush1.bf16.msra.mxu0 %v545
    %747 = vmatprep.subr.bf16.mxu0 %v548
    %748 = vmatpush1.bf16.msra.mxu0 %v547
    %749 = vmatprep.subr.bf16.mxu0 %v550
    %750 = vmatpush1.bf16.msra.mxu0 %v549
    %751 = vmatprep.subr.bf16.mxu0 %v552
    %752 = vmatpush1.bf16.msra.mxu0 %v551
    %753 = vmatprep.subr.bf16.mxu0 %v554
    %754 = vmatpush1.bf16.msra.mxu0 %v553
    %755 = vmatprep.subr.bf16.mxu0 %v556
    %756 = vmatpush1.bf16.msra.mxu0 %v555
    %757 = vmatprep.subr.bf16.mxu0 %v558
    %758 = vmatpush1.bf16.msra.mxu0 %v557
    %759 = vmatprep.mubr.bf16.mxu0 %v117
    %760 = vmatmul.mubr.bf16.gmra.mrb[0].mxu0 %v116
    %v761 = vpop.f32.mrb[0].mxu0
    %v762 = vadd.f32 %v226, %v761
    %v763 = vpop.f32.mrb[0].mxu0
    %v764 = vadd.f32 %v230, %v763
    %v765 = vpop.f32.mrb[0].mxu0
    %v766 = vadd.f32 %v226, %v765
    %v767 = vpop.f32.mrb[0].mxu0
    %v768 = vadd.f32 %v230, %v767
    %769 = vdwg.mxu0
    %770 = vmatprep.subr.bf16.mxu0 %v560
    %771 = vmatpush1.bf16.msra.mxu0 %v559
    %772 = vmatprep.subr.bf16.mxu0 %v562
    %773 = vmatpush1.bf16.msra.mxu0 %v561
    %774 = vmatprep.subr.bf16.mxu0 %v564
    %775 = vmatpush1.bf16.msra.mxu0 %v563
    %776 = vmatprep.subr.bf16.mxu0 %v566
    %777 = vmatpush1.bf16.msra.mxu0 %v565
    %778 = vmatprep.subr.bf16.mxu0 %v568
    %779 = vmatpush1.bf16.msra.mxu0 %v567
    %780 = vmatprep.subr.bf16.mxu0 %v570
    %781 = vmatpush1.bf16.msra.mxu0 %v569
    %782 = vmatprep.subr.bf16.mxu0 %v572
    %783 = vmatpush1.bf16.msra.mxu0 %v571
    %784 = vmatprep.subr.bf16.mxu0 %v574
    %785 = vmatpush1.bf16.msra.mxu0 %v573
    %786 = vmatprep.subr.bf16.mxu0 %v576
    %787 = vmatpush1.bf16.msra.mxu0 %v575
    %788 = vmatprep.subr.bf16.mxu0 %v578
    %789 = vmatpush1.bf16.msra.mxu0 %v577
    %790 = vmatprep.subr.bf16.mxu0 %v580
    %791 = vmatpush1.bf16.msra.mxu0 %v579
    %792 = vmatprep.subr.bf16.mxu0 %v582
    %793 = vmatpush1.bf16.msra.mxu0 %v581
    %794 = vmatprep.subr.bf16.mxu0 %v584
    %795 = vmatpush1.bf16.msra.mxu0 %v583
    %796 = vmatprep.subr.bf16.mxu0 %v586
    %797 = vmatpush1.bf16.msra.mxu0 %v585
    %798 = vmatprep.subr.bf16.mxu0 %v588
    %799 = vmatpush1.bf16.msra.mxu0 %v587
    %800 = vmatprep.subr.bf16.mxu0 %v590
    %801 = vmatpush1.bf16.msra.mxu0 %v589
    %802 = vmatprep.mubr.bf16.mxu0 %v119
    %803 = vmatmul.mubr.bf16.gmra.mrb[0].mxu0 %v118
    %v804 = vpop.f32.mrb[0].mxu0
    %v805 = vadd.f32 %v762, %v804
    %v806 = vpop.f32.mrb[0].mxu0
    %v807 = vadd.f32 %v764, %v806
    %v808 = vpop.f32.mrb[0].mxu0
    %v809 = vadd.f32 %v766, %v808
    %v810 = vpop.f32.mrb[0].mxu0
    %v811 = vadd.f32 %v768, %v810
    %812 = vdwg.mxu0
    %813 = vmatprep.subr.bf16.mxu0 %v592
    %814 = vmatpush1.bf16.msra.mxu0 %v591
    %815 = vmatprep.subr.bf16.mxu0 %v594
    %816 = vmatpush1.bf16.msra.mxu0 %v593
    %817 = vmatprep.subr.bf16.mxu0 %v596
    %818 = vmatpush1.bf16.msra.mxu0 %v595
    %819 = vmatprep.subr.bf16.mxu0 %v598
    %820 = vmatpush1.bf16.msra.mxu0 %v597
    %821 = vmatprep.subr.bf16.mxu0 %v600
    %822 = vmatpush1.bf16.msra.mxu0 %v599
    %823 = vmatprep.subr.bf16.mxu0 %v602
    %824 = vmatpush1.bf16.msra.mxu0 %v601
    %825 = vmatprep.subr.bf16.mxu0 %v604
    %826 = vmatpush1.bf16.msra.mxu0 %v603
    %827 = vmatprep.subr.bf16.mxu0 %v606
    %828 = vmatpush1.bf16.msra.mxu0 %v605
    %829 = vmatprep.subr.bf16.mxu0 %v608
    %830 = vmatpush1.bf16.msra.mxu0 %v607
    %831 = vmatprep.subr.bf16.mxu0 %v610
    %832 = vmatpush1.bf16.msra.mxu0 %v609
    %833 = vmatprep.subr.bf16.mxu0 %v612
    %834 = vmatpush1.bf16.msra.mxu0 %v611
    %835 = vmatprep.subr.bf16.mxu0 %v614
    %836 = vmatpush1.bf16.msra.mxu0 %v613
    %837 = vmatprep.subr.bf16.mxu0 %v616
    %838 = vmatpush1.bf16.msra.mxu0 %v615
    %839 = vmatprep.subr.bf16.mxu0 %v618
    %840 = vmatpush1.bf16.msra.mxu0 %v617
    %841 = vmatprep.subr.bf16.mxu0 %v620
    %842 = vmatpush1.bf16.msra.mxu0 %v619
    %843 = vmatprep.subr.bf16.mxu0 %v622
    %844 = vmatpush1.bf16.msra.mxu0 %v621
    %845 = vmatprep.mubr.bf16.mxu0 %v121
    %846 = vmatmul.mubr.bf16.gmra.mrb[0].mxu0 %v120
    %v847 = vpop.f32.mrb[0].mxu0
    %v848 = vadd.f32 %v805, %v847
    %v849 = vpop.f32.mrb[0].mxu0
    %v850 = vadd.f32 %v807, %v849
    %v851 = vpop.f32.mrb[0].mxu0
    %v852 = vadd.f32 %v809, %v851
    %v853 = vpop.f32.mrb[0].mxu0
    %v854 = vadd.f32 %v811, %v853
    %855 = vdwg.mxu0
    %856 = vmatprep.subr.bf16.mxu0 %v624
    %857 = vmatpush1.bf16.msra.mxu0 %v623
    %858 = vmatprep.subr.bf16.mxu0 0
    %859 = vmatpush1.bf16.msra.mxu0 0
    %860 = vmatprep.subr.bf16.mxu0 0
    %861 = vmatpush1.bf16.msra.mxu0 0
    %862 = vmatprep.subr.bf16.mxu0 0
    %863 = vmatpush1.bf16.msra.mxu0 0
    %864 = vmatprep.subr.bf16.mxu0 0
    %865 = vmatpush1.bf16.msra.mxu0 0
    %866 = vmatprep.subr.bf16.mxu0 0
    %867 = vmatpush1.bf16.msra.mxu0 0
    %868 = vmatprep.subr.bf16.mxu0 0
    %869 = vmatpush1.bf16.msra.mxu0 0
    %870 = vmatprep.subr.bf16.mxu0 0
    %871 = vmatpush1.bf16.msra.mxu0 0
    %872 = vmatprep.subr.bf16.mxu0 0
    %873 = vmatpush1.bf16.msra.mxu0 0
    %874 = vmatprep.subr.bf16.mxu0 0
    %875 = vmatpush1.bf16.msra.mxu0 0
    %876 = vmatprep.subr.bf16.mxu0 0
    %877 = vmatpush1.bf16.msra.mxu0 0
    %878 = vmatprep.subr.bf16.mxu0 0
    %879 = vmatpush1.bf16.msra.mxu0 0
    %880 = vmatprep.subr.bf16.mxu0 0
    %881 = vmatpush1.bf16.msra.mxu0 0
    %882 = vmatprep.subr.bf16.mxu0 0
    %883 = vmatpush1.bf16.msra.mxu0 0
    %884 = vmatprep.subr.bf16.mxu0 0
    %885 = vmatpush1.bf16.msra.mxu0 0
    %886 = vmatprep.subr.bf16.mxu0 0
    %887 = vmatpush1.bf16.msra.mxu0 0
    %888 = vmatprep.mubr.bf16.mxu0 0
    %889 = vmatmul.mubr.bf16.gmra.mrb[0].mxu0 %v725
    %v890 = vpop.f32.mrb[0].mxu0
    %v891 = vadd.f32 %v848, %v890
    %v892 = vpop.f32.mrb[0].mxu0
    %v893 = vadd.f32 %v850, %v892
    %v894 = vpop.f32.mrb[0].mxu0
    %v895 = vadd.f32 %v852, %v894
    %v896 = vpop.f32.mrb[0].mxu0
    %v897 = vadd.f32 %v854, %v896
    %898 = vdwg.mxu0
    %v899 = vmax.f32 %v891, 0.0
    %v900 = vmax.f32 %v893, 0.0
    %v901 = vmax.f32 %v895, 0.0
    %v902 = vmax.f32 %v897, 0.0
    %v903 = vpack.c.bf16 %v901, %v899
    %v904 = vpack.c.bf16 %v902, %v900
    %v905 = vld [vmem:[#allocation7] sm:$0xff]
    %v906 = vld [vmem:[#allocation7 + $0x8] sm:$0xff]
    %v907 = vld [vmem:[#allocation7 + $0x10] sm:$0xff]
    %v908 = vld [vmem:[#allocation7 + $0x18] sm:$0xff]
    %v909 = vld [vmem:[#allocation7 + $0x20] sm:$0xff]
    %v910 = vld [vmem:[#allocation7 + $0x28] sm:$0xff]
    %v911 = vld [vmem:[#allocation7 + $0x30] sm:$0xff]
    %v912 = vld [vmem:[#allocation7 + $0x38] sm:$0xff]
    %v913 = vld [vmem:[#allocation7 + $0x40] sm:$0xff]
    %v914 = vld [vmem:[#allocation7 + $0x48] sm:$0xff]
    %v915 = vld [vmem:[#allocation7 + $0x50] sm:$0xff]
    %v916 = vld [vmem:[#allocation7 + $0x58] sm:$0xff]
    %v917 = vld [vmem:[#allocation7 + $0x60] sm:$0xff]
    %v918 = vld [vmem:[#allocation7 + $0x68] sm:$0xff]
    %v919 = vld [vmem:[#allocation7 + $0x70] sm:$0xff]
    %v920 = vld [vmem:[#allocation7 + $0x78] sm:$0xff]
    %v921 = vld [vmem:[#allocation7 + $0x80] sm:$0xff]
    %v922 = vld [vmem:[#allocation7 + $0x88] sm:$0xff]
    %v923 = vld [vmem:[#allocation7 + $0x90] sm:$0xff]
    %v924 = vld [vmem:[#allocation7 + $0x98] sm:$0xff]
    %v925 = vld [vmem:[#allocation7 + $0xa0] sm:$0xff]
    %v926 = vld [vmem:[#allocation7 + $0xa8] sm:$0xff]
    %v927 = vld [vmem:[#allocation7 + $0xb0] sm:$0xff]
    %v928 = vld [vmem:[#allocation7 + $0xb8] sm:$0xff]
    %v929 = vld [vmem:[#allocation7 + $0xc0] sm:$0xff]
    %v930 = vld [vmem:[#allocation7 + $0xc8] sm:$0xff]
    %v931 = vld [vmem:[#allocation7 + $0xd0] sm:$0xff]
    %v932 = vld [vmem:[#allocation7 + $0xd8] sm:$0xff]
    %v933 = vld [vmem:[#allocation7 + $0xe0] sm:$0xff]
    %v934 = vld [vmem:[#allocation7 + $0xe8] sm:$0xff]
    %v935 = vld [vmem:[#allocation7 + $0xf0] sm:$0xff]
    %v936 = vld [vmem:[#allocation7 + $0xf8] sm:$0xff]
    %v937 = vld [vmem:[%s4] sm:$0x3]
    %v939 = vlaneseq
    %v940 = vshrl.u32 %v939, 7
    %v941 = vsub.s32 0, %v940
    %v942 = vrot.slane %v937, %v941
    %v943 = vlaneseq
    %v944 = vshrl.u32 %v943, 7
    %v945 = vsub.s32 1, %v944
    %v946 = vrot.slane %v937, %v945
    %v981 = vunpack.c.l.b16 %v905
    %v982 = vunpack.c.h.b16 %v905
    %v983 = vunpack.c.l.b16 %v906
    %v984 = vunpack.c.h.b16 %v906
    %v985 = vunpack.c.l.b16 %v907
    %v986 = vunpack.c.h.b16 %v907
    %v987 = vunpack.c.l.b16 %v908
    %v988 = vunpack.c.h.b16 %v908
    %v989 = vunpack.c.l.b16 %v909
    %v990 = vunpack.c.h.b16 %v909
    %v991 = vunpack.c.l.b16 %v910
    %v992 = vunpack.c.h.b16 %v910
    %v993 = vunpack.c.l.b16 %v911
    %v994 = vunpack.c.h.b16 %v911
    %v995 = vunpack.c.l.b16 %v912
    %v996 = vunpack.c.h.b16 %v912
    %v997 = vunpack.c.l.b16 %v913
    %v998 = vunpack.c.h.b16 %v913
    %v999 = vunpack.c.l.b16 %v914
    %v1000 = vunpack.c.h.b16 %v914
    %v1001 = vunpack.c.l.b16 %v915
    %v1002 = vunpack.c.h.b16 %v915
    %v1003 = vunpack.c.l.b16 %v916
    %v1004 = vunpack.c.h.b16 %v916
    %v1005 = vunpack.c.l.b16 %v917
    %v1006 = vunpack.c.h.b16 %v917
    %v1007 = vunpack.c.l.b16 %v918
    %v1008 = vunpack.c.h.b16 %v918
    %v1009 = vunpack.c.l.b16 %v919
    %v1010 = vunpack.c.h.b16 %v919
    %v1011 = vunpack.c.l.b16 %v920
    %v1012 = vunpack.c.h.b16 %v920
    %v1013 = vunpack.c.l.b16 %v921
    %v1014 = vunpack.c.h.b16 %v921
    %v1015 = vunpack.c.l.b16 %v922
    %v1016 = vunpack.c.h.b16 %v922
    %v1017 = vunpack.c.l.b16 %v923
    %v1018 = vunpack.c.h.b16 %v923
    %v1019 = vunpack.c.l.b16 %v924
    %v1020 = vunpack.c.h.b16 %v924
    %v1021 = vunpack.c.l.b16 %v925
    %v1022 = vunpack.c.h.b16 %v925
    %v1023 = vunpack.c.l.b16 %v926
    %v1024 = vunpack.c.h.b16 %v926
    %v1025 = vunpack.c.l.b16 %v927
    %v1026 = vunpack.c.h.b16 %v927
    %v1027 = vunpack.c.l.b16 %v928
    %v1028 = vunpack.c.h.b16 %v928
    %v1029 = vunpack.c.l.b16 %v929
    %v1030 = vunpack.c.h.b16 %v929
    %v1031 = vunpack.c.l.b16 %v930
    %v1032 = vunpack.c.h.b16 %v930
    %v1033 = vunpack.c.l.b16 %v931
    %v1034 = vunpack.c.h.b16 %v931
    %v1035 = vunpack.c.l.b16 %v932
    %v1036 = vunpack.c.h.b16 %v932
    %v1037 = vunpack.c.l.b16 %v933
    %v1038 = vunpack.c.h.b16 %v933
    %v1039 = vunpack.c.l.b16 %v934
    %v1040 = vunpack.c.h.b16 %v934
    %v1041 = vunpack.c.l.b16 %v935
    %v1042 = vunpack.c.h.b16 %v935
    %v1043 = vunpack.c.l.b16 %v936
    %v1044 = vunpack.c.h.b16 %v936
    %v1045 = vpack.c.b16 %v983, %v981
    %v1046 = vpack.c.b16 %v984, %v982
    %v1047 = vpack.c.b16 %v987, %v985
    %v1048 = vpack.c.b16 %v988, %v986
    %v1049 = vpack.c.b16 %v991, %v989
    %v1050 = vpack.c.b16 %v992, %v990
    %v1051 = vpack.c.b16 %v995, %v993
    %v1052 = vpack.c.b16 %v996, %v994
    %v1053 = vpack.c.b16 %v999, %v997
    %v1054 = vpack.c.b16 %v1000, %v998
    %v1055 = vpack.c.b16 %v1003, %v1001
    %v1056 = vpack.c.b16 %v1004, %v1002
    %v1057 = vpack.c.b16 %v1007, %v1005
    %v1058 = vpack.c.b16 %v1008, %v1006
    %v1059 = vpack.c.b16 %v1011, %v1009
    %v1060 = vpack.c.b16 %v1012, %v1010
    %v1061 = vpack.c.b16 %v1015, %v1013
    %v1062 = vpack.c.b16 %v1016, %v1014
    %v1063 = vpack.c.b16 %v1019, %v1017
    %v1064 = vpack.c.b16 %v1020, %v1018
    %v1065 = vpack.c.b16 %v1023, %v1021
    %v1066 = vpack.c.b16 %v1024, %v1022
    %v1067 = vpack.c.b16 %v1027, %v1025
    %v1068 = vpack.c.b16 %v1028, %v1026
    %v1069 = vpack.c.b16 %v1031, %v1029
    %v1070 = vpack.c.b16 %v1032, %v1030
    %v1071 = vpack.c.b16 %v1035, %v1033
    %v1072 = vpack.c.b16 %v1036, %v1034
    %v1073 = vpack.c.b16 %v1039, %v1037
    %v1074 = vpack.c.b16 %v1040, %v1038
    %v1075 = vpack.c.b16 %v1043, %v1041
    %v1076 = vpack.c.b16 %v1044, %v1042
    %1109 = vmatprep.subr.bf16.mxu0 %v1046
    %1110 = vmatpush1.bf16.msra.mxu0 %v1045
    %1111 = vmatprep.subr.bf16.mxu0 %v1048
    %1112 = vmatpush1.bf16.msra.mxu0 %v1047
    %1113 = vmatprep.subr.bf16.mxu0 %v1050
    %1114 = vmatpush1.bf16.msra.mxu0 %v1049
    %1115 = vmatprep.subr.bf16.mxu0 %v1052
    %1116 = vmatpush1.bf16.msra.mxu0 %v1051
    %1117 = vmatprep.subr.bf16.mxu0 %v1054
    %1118 = vmatpush1.bf16.msra.mxu0 %v1053
    %1119 = vmatprep.subr.bf16.mxu0 %v1056
    %1120 = vmatpush1.bf16.msra.mxu0 %v1055
    %1121 = vmatprep.subr.bf16.mxu0 %v1058
    %1122 = vmatpush1.bf16.msra.mxu0 %v1057
    %1123 = vmatprep.subr.bf16.mxu0 %v1060
    %1124 = vmatpush1.bf16.msra.mxu0 %v1059
    %1125 = vmatprep.subr.bf16.mxu0 %v1062
    %1126 = vmatpush1.bf16.msra.mxu0 %v1061
    %1127 = vmatprep.subr.bf16.mxu0 %v1064
    %1128 = vmatpush1.bf16.msra.mxu0 %v1063
    %1129 = vmatprep.subr.bf16.mxu0 %v1066
    %1130 = vmatpush1.bf16.msra.mxu0 %v1065
    %1131 = vmatprep.subr.bf16.mxu0 %v1068
    %1132 = vmatpush1.bf16.msra.mxu0 %v1067
    %1133 = vmatprep.subr.bf16.mxu0 %v1070
    %1134 = vmatpush1.bf16.msra.mxu0 %v1069
    %1135 = vmatprep.subr.bf16.mxu0 %v1072
    %1136 = vmatpush1.bf16.msra.mxu0 %v1071
    %1137 = vmatprep.subr.bf16.mxu0 %v1074
    %1138 = vmatpush1.bf16.msra.mxu0 %v1073
    %1139 = vmatprep.subr.bf16.mxu0 %v1076
    %1140 = vmatpush1.bf16.msra.mxu0 %v1075
    %1141 = vmatprep.mubr.bf16.mxu0 %v904
    %1142 = vmatmul.mubr.bf16.gmra.mrb[0].mxu0 %v903
    %v1143 = vpop.f32.mrb[0].mxu0
    %v1144 = vadd.f32 %v942, %v1143
    %v1145 = vpop.f32.mrb[0].mxu0
    %v1146 = vadd.f32 %v946, %v1145
    %v1147 = vpop.f32.mrb[0].mxu0
    %v1148 = vadd.f32 %v942, %v1147
    %v1149 = vpop.f32.mrb[0].mxu0
    %v1150 = vadd.f32 %v946, %v1149
    %1151 = vdwg.mxu0
    %v1152 = vmax.f32 %v1144, 0.0
    %v1153 = vmax.f32 %v1146, 0.0
    %v1154 = vmax.f32 %v1148, 0.0
    %v1155 = vmax.f32 %v1150, 0.0
    %v1156 = vpack.c.bf16 %v1154, %v1152
    %v1157 = vpack.c.bf16 %v1155, %v1153
    %v1158 = vld [vmem:[#allocation8] sm:$0xff]
    %v1159 = vld [vmem:[#allocation8 + $0x8] sm:$0xff]
    %v1160 = vld [vmem:[#allocation8 + $0x10] sm:$0xff]
    %v1161 = vld [vmem:[#allocation8 + $0x18] sm:$0xff]
    %v1162 = vld [vmem:[#allocation8 + $0x20] sm:$0xff]
    %v1163 = vld [vmem:[#allocation8 + $0x28] sm:$0xff]
    %v1164 = vld [vmem:[#allocation8 + $0x30] sm:$0xff]
    %v1165 = vld [vmem:[#allocation8 + $0x38] sm:$0xff]
    %v1166 = vld [vmem:[#allocation8 + $0x40] sm:$0xff]
    %v1167 = vld [vmem:[#allocation8 + $0x48] sm:$0xff]
    %v1168 = vld [vmem:[#allocation8 + $0x50] sm:$0xff]
    %v1169 = vld [vmem:[#allocation8 + $0x58] sm:$0xff]
    %v1170 = vld [vmem:[#allocation8 + $0x60] sm:$0xff]
    %v1171 = vld [vmem:[#allocation8 + $0x68] sm:$0xff]
    %v1172 = vld [vmem:[#allocation8 + $0x70] sm:$0xff]
    %v1173 = vld [vmem:[#allocation8 + $0x78] sm:$0xff]
    %v1174 = vld [vmem:[#allocation8 + $0x80] sm:$0xff]
    %v1175 = vld [vmem:[#allocation8 + $0x88] sm:$0xff]
    %v1176 = vld [vmem:[#allocation8 + $0x90] sm:$0xff]
    %v1177 = vld [vmem:[#allocation8 + $0x98] sm:$0xff]
    %v1178 = vld [vmem:[#allocation8 + $0xa0] sm:$0xff]
    %v1179 = vld [vmem:[#allocation8 + $0xa8] sm:$0xff]
    %v1180 = vld [vmem:[#allocation8 + $0xb0] sm:$0xff]
    %v1181 = vld [vmem:[#allocation8 + $0xb8] sm:$0xff]
    %v1182 = vld [vmem:[#allocation8 + $0xc0] sm:$0xff]
    %v1183 = vld [vmem:[#allocation8 + $0xc8] sm:$0xff]
    %v1184 = vld [vmem:[#allocation8 + $0xd0] sm:$0xff]
    %v1185 = vld [vmem:[#allocation8 + $0xd8] sm:$0xff]
    %v1186 = vld [vmem:[#allocation8 + $0xe0] sm:$0xff]
    %v1187 = vld [vmem:[#allocation8 + $0xe8] sm:$0xff]
    %v1188 = vld [vmem:[#allocation8 + $0xf0] sm:$0xff]
    %v1189 = vld [vmem:[#allocation8 + $0xf8] sm:$0xff]
    %v1190 = vld [vmem:[#allocation8 + $0x100] sm:$0xff]
    %v1191 = vld [vmem:[#allocation8 + $0x108] sm:$0xff]
    %v1192 = vld [vmem:[#allocation8 + $0x110] sm:$0xff]
    %v1193 = vld [vmem:[#allocation8 + $0x118] sm:$0xff]
    %v1194 = vld [vmem:[#allocation8 + $0x120] sm:$0xff]
    %v1195 = vld [vmem:[#allocation8 + $0x128] sm:$0xff]
    %v1196 = vld [vmem:[#allocation8 + $0x130] sm:$0xff]
    %v1197 = vld [vmem:[#allocation8 + $0x138] sm:$0xff]
    %v1198 = vld [vmem:[#allocation8 + $0x140] sm:$0xff]
    %v1199 = vld [vmem:[#allocation8 + $0x148] sm:$0xff]
    %v1200 = vld [vmem:[#allocation8 + $0x150] sm:$0xff]
    %v1201 = vld [vmem:[#allocation8 + $0x158] sm:$0xff]
    %v1202 = vld [vmem:[#allocation8 + $0x160] sm:$0xff]
    %v1203 = vld [vmem:[#allocation8 + $0x168] sm:$0xff]
    %v1204 = vld [vmem:[#allocation8 + $0x170] sm:$0xff]
    %v1205 = vld [vmem:[#allocation8 + $0x178] sm:$0xff]
    %v1206 = vld [vmem:[#allocation8 + $0x180] sm:$0xff]
    %v1207 = vld [vmem:[#allocation8 + $0x188] sm:$0xff]
    %v1208 = vld [vmem:[#allocation8 + $0x190] sm:$0xff]
    %v1209 = vld [vmem:[#allocation8 + $0x198] sm:$0xff]
    %v1210 = vld [vmem:[#allocation8 + $0x1a0] sm:$0xff]
    %v1211 = vld [vmem:[#allocation8 + $0x1a8] sm:$0xff]
    %v1212 = vld [vmem:[#allocation8 + $0x1b0] sm:$0xff]
    %v1213 = vld [vmem:[#allocation8 + $0x1b8] sm:$0xff]
    %v1214 = vld [vmem:[#allocation8 + $0x1c0] sm:$0xff]
    %v1215 = vld [vmem:[#allocation8 + $0x1c8] sm:$0xff]
    %v1216 = vld [vmem:[#allocation8 + $0x1d0] sm:$0xff]
    %v1217 = vld [vmem:[#allocation8 + $0x1d8] sm:$0xff]
    %v1218 = vld [vmem:[#allocation8 + $0x1e0] sm:$0xff]
    %v1219 = vld [vmem:[#allocation8 + $0x1e8] sm:$0xff]
    %v1220 = vld [vmem:[#allocation8 + $0x1f0] sm:$0xff]
    %v1221 = vld [vmem:[#allocation8 + $0x1f8] sm:$0xff]
    %v1222 = vld [vmem:[%s6] sm:$0xf]
    %v1224 = vlaneseq
    %v1225 = vshrl.u32 %v1224, 7
    %v1226 = vsub.s32 0, %v1225
    %v1227 = vrot.slane %v1222, %v1226
    %v1228 = vlaneseq
    %v1229 = vshrl.u32 %v1228, 7
    %v1230 = vsub.s32 1, %v1229
    %v1231 = vrot.slane %v1222, %v1230
    %v1232 = vlaneseq
    %v1233 = vshrl.u32 %v1232, 7
    %v1234 = vsub.s32 2, %v1233
    %v1235 = vrot.slane %v1222, %v1234
    %v1236 = vlaneseq
    %v1237 = vshrl.u32 %v1236, 7
    %v1238 = vsub.s32 3, %v1237
    %v1239 = vrot.slane %v1222, %v1238
    %v1308 = vunpack.c.l.b16 %v1158
    %v1309 = vunpack.c.h.b16 %v1158
    %v1310 = vunpack.c.l.b16 %v1159
    %v1311 = vunpack.c.h.b16 %v1159
    %v1312 = vunpack.c.l.b16 %v1160
    %v1313 = vunpack.c.h.b16 %v1160
    %v1314 = vunpack.c.l.b16 %v1161
    %v1315 = vunpack.c.h.b16 %v1161
    %v1316 = vunpack.c.l.b16 %v1162
    %v1317 = vunpack.c.h.b16 %v1162
    %v1318 = vunpack.c.l.b16 %v1163
    %v1319 = vunpack.c.h.b16 %v1163
    %v1320 = vunpack.c.l.b16 %v1164
    %v1321 = vunpack.c.h.b16 %v1164
    %v1322 = vunpack.c.l.b16 %v1165
    %v1323 = vunpack.c.h.b16 %v1165
    %v1324 = vunpack.c.l.b16 %v1166
    %v1325 = vunpack.c.h.b16 %v1166
    %v1326 = vunpack.c.l.b16 %v1167
    %v1327 = vunpack.c.h.b16 %v1167
    %v1328 = vunpack.c.l.b16 %v1168
    %v1329 = vunpack.c.h.b16 %v1168
    %v1330 = vunpack.c.l.b16 %v1169
    %v1331 = vunpack.c.h.b16 %v1169
    %v1332 = vunpack.c.l.b16 %v1170
    %v1333 = vunpack.c.h.b16 %v1170
    %v1334 = vunpack.c.l.b16 %v1171
    %v1335 = vunpack.c.h.b16 %v1171
    %v1336 = vunpack.c.l.b16 %v1172
    %v1337 = vunpack.c.h.b16 %v1172
    %v1338 = vunpack.c.l.b16 %v1173
    %v1339 = vunpack.c.h.b16 %v1173
    %v1340 = vunpack.c.l.b16 %v1174
    %v1341 = vunpack.c.h.b16 %v1174
    %v1342 = vunpack.c.l.b16 %v1175
    %v1343 = vunpack.c.h.b16 %v1175
    %v1344 = vunpack.c.l.b16 %v1176
    %v1345 = vunpack.c.h.b16 %v1176
    %v1346 = vunpack.c.l.b16 %v1177
    %v1347 = vunpack.c.h.b16 %v1177
    %v1348 = vunpack.c.l.b16 %v1178
    %v1349 = vunpack.c.h.b16 %v1178
    %v1350 = vunpack.c.l.b16 %v1179
    %v1351 = vunpack.c.h.b16 %v1179
    %v1352 = vunpack.c.l.b16 %v1180
    %v1353 = vunpack.c.h.b16 %v1180
    %v1354 = vunpack.c.l.b16 %v1181
    %v1355 = vunpack.c.h.b16 %v1181
    %v1356 = vunpack.c.l.b16 %v1182
    %v1357 = vunpack.c.h.b16 %v1182
    %v1358 = vunpack.c.l.b16 %v1183
    %v1359 = vunpack.c.h.b16 %v1183
    %v1360 = vunpack.c.l.b16 %v1184
    %v1361 = vunpack.c.h.b16 %v1184
    %v1362 = vunpack.c.l.b16 %v1185
    %v1363 = vunpack.c.h.b16 %v1185
    %v1364 = vunpack.c.l.b16 %v1186
    %v1365 = vunpack.c.h.b16 %v1186
    %v1366 = vunpack.c.l.b16 %v1187
    %v1367 = vunpack.c.h.b16 %v1187
    %v1368 = vunpack.c.l.b16 %v1188
    %v1369 = vunpack.c.h.b16 %v1188
    %v1370 = vunpack.c.l.b16 %v1189
    %v1371 = vunpack.c.h.b16 %v1189
    %v1372 = vunpack.c.l.b16 %v1190
    %v1373 = vunpack.c.h.b16 %v1190
    %v1374 = vunpack.c.l.b16 %v1191
    %v1375 = vunpack.c.h.b16 %v1191
    %v1376 = vunpack.c.l.b16 %v1192
    %v1377 = vunpack.c.h.b16 %v1192
    %v1378 = vunpack.c.l.b16 %v1193
    %v1379 = vunpack.c.h.b16 %v1193
    %v1380 = vunpack.c.l.b16 %v1194
    %v1381 = vunpack.c.h.b16 %v1194
    %v1382 = vunpack.c.l.b16 %v1195
    %v1383 = vunpack.c.h.b16 %v1195
    %v1384 = vunpack.c.l.b16 %v1196
    %v1385 = vunpack.c.h.b16 %v1196
    %v1386 = vunpack.c.l.b16 %v1197
    %v1387 = vunpack.c.h.b16 %v1197
    %v1388 = vunpack.c.l.b16 %v1198
    %v1389 = vunpack.c.h.b16 %v1198
    %v1390 = vunpack.c.l.b16 %v1199
    %v1391 = vunpack.c.h.b16 %v1199
    %v1392 = vunpack.c.l.b16 %v1200
    %v1393 = vunpack.c.h.b16 %v1200
    %v1394 = vunpack.c.l.b16 %v1201
    %v1395 = vunpack.c.h.b16 %v1201
    %v1396 = vunpack.c.l.b16 %v1202
    %v1397 = vunpack.c.h.b16 %v1202
    %v1398 = vunpack.c.l.b16 %v1203
    %v1399 = vunpack.c.h.b16 %v1203
    %v1400 = vunpack.c.l.b16 %v1204
    %v1401 = vunpack.c.h.b16 %v1204
    %v1402 = vunpack.c.l.b16 %v1205
    %v1403 = vunpack.c.h.b16 %v1205
    %v1404 = vunpack.c.l.b16 %v1206
    %v1405 = vunpack.c.h.b16 %v1206
    %v1406 = vunpack.c.l.b16 %v1207
    %v1407 = vunpack.c.h.b16 %v1207
    %v1408 = vunpack.c.l.b16 %v1208
    %v1409 = vunpack.c.h.b16 %v1208
    %v1410 = vunpack.c.l.b16 %v1209
    %v1411 = vunpack.c.h.b16 %v1209
    %v1412 = vunpack.c.l.b16 %v1210
    %v1413 = vunpack.c.h.b16 %v1210
    %v1414 = vunpack.c.l.b16 %v1211
    %v1415 = vunpack.c.h.b16 %v1211
    %v1416 = vunpack.c.l.b16 %v1212
    %v1417 = vunpack.c.h.b16 %v1212
    %v1418 = vunpack.c.l.b16 %v1213
    %v1419 = vunpack.c.h.b16 %v1213
    %v1420 = vunpack.c.l.b16 %v1214
    %v1421 = vunpack.c.h.b16 %v1214
    %v1422 = vunpack.c.l.b16 %v1215
    %v1423 = vunpack.c.h.b16 %v1215
    %v1424 = vunpack.c.l.b16 %v1216
    %v1425 = vunpack.c.h.b16 %v1216
    %v1426 = vunpack.c.l.b16 %v1217
    %v1427 = vunpack.c.h.b16 %v1217
    %v1428 = vunpack.c.l.b16 %v1218
    %v1429 = vunpack.c.h.b16 %v1218
    %v1430 = vunpack.c.l.b16 %v1219
    %v1431 = vunpack.c.h.b16 %v1219
    %v1432 = vunpack.c.l.b16 %v1220
    %v1433 = vunpack.c.h.b16 %v1220
    %v1434 = vunpack.c.l.b16 %v1221
    %v1435 = vunpack.c.h.b16 %v1221
    %v1436 = vpack.c.b16 %v1312, %v1308
    %v1437 = vpack.c.b16 %v1313, %v1309
    %v1438 = vpack.c.b16 %v1314, %v1310
    %v1439 = vpack.c.b16 %v1315, %v1311
    %v1440 = vpack.c.b16 %v1320, %v1316
    %v1441 = vpack.c.b16 %v1321, %v1317
    %v1442 = vpack.c.b16 %v1322, %v1318
    %v1443 = vpack.c.b16 %v1323, %v1319
    %v1444 = vpack.c.b16 %v1328, %v1324
    %v1445 = vpack.c.b16 %v1329, %v1325
    %v1446 = vpack.c.b16 %v1330, %v1326
    %v1447 = vpack.c.b16 %v1331, %v1327
    %v1448 = vpack.c.b16 %v1336, %v1332
    %v1449 = vpack.c.b16 %v1337, %v1333
    %v1450 = vpack.c.b16 %v1338, %v1334
    %v1451 = vpack.c.b16 %v1339, %v1335
    %v1452 = vpack.c.b16 %v1344, %v1340
    %v1453 = vpack.c.b16 %v1345, %v1341
    %v1454 = vpack.c.b16 %v1346, %v1342
    %v1455 = vpack.c.b16 %v1347, %v1343
    %v1456 = vpack.c.b16 %v1352, %v1348
    %v1457 = vpack.c.b16 %v1353, %v1349
    %v1458 = vpack.c.b16 %v1354, %v1350
    %v1459 = vpack.c.b16 %v1355, %v1351
    %v1460 = vpack.c.b16 %v1360, %v1356
    %v1461 = vpack.c.b16 %v1361, %v1357
    %v1462 = vpack.c.b16 %v1362, %v1358
    %v1463 = vpack.c.b16 %v1363, %v1359
    %v1464 = vpack.c.b16 %v1368, %v1364
    %v1465 = vpack.c.b16 %v1369, %v1365
    %v1466 = vpack.c.b16 %v1370, %v1366
    %v1467 = vpack.c.b16 %v1371, %v1367
    %v1468 = vpack.c.b16 %v1376, %v1372
    %v1469 = vpack.c.b16 %v1377, %v1373
    %v1470 = vpack.c.b16 %v1378, %v1374
    %v1471 = vpack.c.b16 %v1379, %v1375
    %v1472 = vpack.c.b16 %v1384, %v1380
    %v1473 = vpack.c.b16 %v1385, %v1381
    %v1474 = vpack.c.b16 %v1386, %v1382
    %v1475 = vpack.c.b16 %v1387, %v1383
    %v1476 = vpack.c.b16 %v1392, %v1388
    %v1477 = vpack.c.b16 %v1393, %v1389
    %v1478 = vpack.c.b16 %v1394, %v1390
    %v1479 = vpack.c.b16 %v1395, %v1391
    %v1480 = vpack.c.b16 %v1400, %v1396
    %v1481 = vpack.c.b16 %v1401, %v1397
    %v1482 = vpack.c.b16 %v1402, %v1398
    %v1483 = vpack.c.b16 %v1403, %v1399
    %v1484 = vpack.c.b16 %v1408, %v1404
    %v1485 = vpack.c.b16 %v1409, %v1405
    %v1486 = vpack.c.b16 %v1410, %v1406
    %v1487 = vpack.c.b16 %v1411, %v1407
    %v1488 = vpack.c.b16 %v1416, %v1412
    %v1489 = vpack.c.b16 %v1417, %v1413
    %v1490 = vpack.c.b16 %v1418, %v1414
    %v1491 = vpack.c.b16 %v1419, %v1415
    %v1492 = vpack.c.b16 %v1424, %v1420
    %v1493 = vpack.c.b16 %v1425, %v1421
    %v1494 = vpack.c.b16 %v1426, %v1422
    %v1495 = vpack.c.b16 %v1427, %v1423
    %v1496 = vpack.c.b16 %v1432, %v1428
    %v1497 = vpack.c.b16 %v1433, %v1429
    %v1498 = vpack.c.b16 %v1434, %v1430
    %v1499 = vpack.c.b16 %v1435, %v1431
    %1564 = vmatprep.subr.bf16.mxu0 %v1437
    %1565 = vmatpush1.bf16.msra.mxu0 %v1436
    %1566 = vmatprep.subr.bf16.mxu0 %v1441
    %1567 = vmatpush1.bf16.msra.mxu0 %v1440
    %1568 = vmatprep.subr.bf16.mxu0 %v1445
    %1569 = vmatpush1.bf16.msra.mxu0 %v1444
    %1570 = vmatprep.subr.bf16.mxu0 %v1449
    %1571 = vmatpush1.bf16.msra.mxu0 %v1448
    %1572 = vmatprep.subr.bf16.mxu0 %v1453
    %1573 = vmatpush1.bf16.msra.mxu0 %v1452
    %1574 = vmatprep.subr.bf16.mxu0 %v1457
    %1575 = vmatpush1.bf16.msra.mxu0 %v1456
    %1576 = vmatprep.subr.bf16.mxu0 %v1461
    %1577 = vmatpush1.bf16.msra.mxu0 %v1460
    %1578 = vmatprep.subr.bf16.mxu0 %v1465
    %1579 = vmatpush1.bf16.msra.mxu0 %v1464
    %1580 = vmatprep.subr.bf16.mxu0 %v1469
    %1581 = vmatpush1.bf16.msra.mxu0 %v1468
    %1582 = vmatprep.subr.bf16.mxu0 %v1473
    %1583 = vmatpush1.bf16.msra.mxu0 %v1472
    %1584 = vmatprep.subr.bf16.mxu0 %v1477
    %1585 = vmatpush1.bf16.msra.mxu0 %v1476
    %1586 = vmatprep.subr.bf16.mxu0 %v1481
    %1587 = vmatpush1.bf16.msra.mxu0 %v1480
    %1588 = vmatprep.subr.bf16.mxu0 %v1485
    %1589 = vmatpush1.bf16.msra.mxu0 %v1484
    %1590 = vmatprep.subr.bf16.mxu0 %v1489
    %1591 = vmatpush1.bf16.msra.mxu0 %v1488
    %1592 = vmatprep.subr.bf16.mxu0 %v1493
    %1593 = vmatpush1.bf16.msra.mxu0 %v1492
    %1594 = vmatprep.subr.bf16.mxu0 %v1497
    %1595 = vmatpush1.bf16.msra.mxu0 %v1496
    %1596 = vmatprep.mubr.bf16.mxu0 %v1157
    %1597 = vmatmul.mubr.bf16.gmra.mrb[0].mxu0 %v1156
    %v1598 = vpop.f32.mrb[0].mxu0
    %v1599 = vadd.f32 %v1227, %v1598
    %v1600 = vpop.f32.mrb[0].mxu0
    %v1601 = vadd.f32 %v1231, %v1600
    %v1602 = vpop.f32.mrb[0].mxu0
    %v1603 = vadd.f32 %v1227, %v1602
    %v1604 = vpop.f32.mrb[0].mxu0
    %v1605 = vadd.f32 %v1231, %v1604
    %1606 = vdwg.mxu0
    %1607 = vmatprep.subr.bf16.mxu0 %v1439
    %1608 = vmatpush1.bf16.msra.mxu0 %v1438
    %1609 = vmatprep.subr.bf16.mxu0 %v1443
    %1610 = vmatpush1.bf16.msra.mxu0 %v1442
    %1611 = vmatprep.subr.bf16.mxu0 %v1447
    %1612 = vmatpush1.bf16.msra.mxu0 %v1446
    %1613 = vmatprep.subr.bf16.mxu0 %v1451
    %1614 = vmatpush1.bf16.msra.mxu0 %v1450
    %1615 = vmatprep.subr.bf16.mxu0 %v1455
    %1616 = vmatpush1.bf16.msra.mxu0 %v1454
    %1617 = vmatprep.subr.bf16.mxu0 %v1459
    %1618 = vmatpush1.bf16.msra.mxu0 %v1458
    %1619 = vmatprep.subr.bf16.mxu0 %v1463
    %1620 = vmatpush1.bf16.msra.mxu0 %v1462
    %1621 = vmatprep.subr.bf16.mxu0 %v1467
    %1622 = vmatpush1.bf16.msra.mxu0 %v1466
    %1623 = vmatprep.subr.bf16.mxu0 %v1471
    %1624 = vmatpush1.bf16.msra.mxu0 %v1470
    %1625 = vmatprep.subr.bf16.mxu0 %v1475
    %1626 = vmatpush1.bf16.msra.mxu0 %v1474
    %1627 = vmatprep.subr.bf16.mxu0 %v1479
    %1628 = vmatpush1.bf16.msra.mxu0 %v1478
    %1629 = vmatprep.subr.bf16.mxu0 %v1483
    %1630 = vmatpush1.bf16.msra.mxu0 %v1482
    %1631 = vmatprep.subr.bf16.mxu0 %v1487
    %1632 = vmatpush1.bf16.msra.mxu0 %v1486
    %1633 = vmatprep.subr.bf16.mxu0 %v1491
    %1634 = vmatpush1.bf16.msra.mxu0 %v1490
    %1635 = vmatprep.subr.bf16.mxu0 %v1495
    %1636 = vmatpush1.bf16.msra.mxu0 %v1494
    %1637 = vmatprep.subr.bf16.mxu0 %v1499
    %1638 = vmatpush1.bf16.msra.mxu0 %v1498
    %1639 = vmatprep.mubr.bf16.mxu0 %v1157
    %1640 = vmatmul.mubr.bf16.gmra.mrb[0].mxu0 %v1156
    %v1641 = vpop.f32.mrb[0].mxu0
    %v1642 = vadd.f32 %v1235, %v1641
    %v1643 = vpop.f32.mrb[0].mxu0
    %v1644 = vadd.f32 %v1239, %v1643
    %v1645 = vpop.f32.mrb[0].mxu0
    %v1646 = vadd.f32 %v1235, %v1645
    %v1647 = vpop.f32.mrb[0].mxu0
    %v1648 = vadd.f32 %v1239, %v1647
    %1649 = vdwg.mxu0
    %v1650 = vmax.f32 %v1599, 0.0
    %v1651 = vmax.f32 %v1601, 0.0
    %v1652 = vmax.f32 %v1642, 0.0
    %v1653 = vmax.f32 %v1644, 0.0
    %v1654 = vmax.f32 %v1603, 0.0
    %v1655 = vmax.f32 %v1605, 0.0
    %v1656 = vmax.f32 %v1646, 0.0
    %v1657 = vmax.f32 %v1648, 0.0
    %v1658 = vpack.c.bf16 %v1654, %v1650
    %v1659 = vpack.c.bf16 %v1655, %v1651
    %v1660 = vpack.c.bf16 %v1656, %v1652
    %v1661 = vpack.c.bf16 %v1657, %v1653
    %v1662 = vld [vmem:[#allocation10] sm:$0xf]
    %v1663 = vld [vmem:[#allocation10 + $0x4] sm:$0xf]
    %v1664 = vld [vmem:[#allocation10 + $0x8] sm:$0xf]
    %v1665 = vld [vmem:[#allocation10 + $0xc] sm:$0xf]
    %v1666 = vld [vmem:[#allocation10 + $0x10] sm:$0xf]
    %v1667 = vld [vmem:[#allocation10 + $0x14] sm:$0xf]
    %v1668 = vld [vmem:[#allocation10 + $0x18] sm:$0xf]
    %v1669 = vld [vmem:[#allocation10 + $0x1c] sm:$0xf]
    %v1670 = vld [vmem:[#allocation10 + $0x20] sm:$0xf]
    %v1671 = vld [vmem:[#allocation10 + $0x24] sm:$0xf]
    %v1672 = vld [vmem:[#allocation10 + $0x28] sm:$0xf]
    %v1673 = vld [vmem:[#allocation10 + $0x2c] sm:$0xf]
    %v1674 = vld [vmem:[#allocation10 + $0x30] sm:$0xf]
    %v1675 = vld [vmem:[#allocation10 + $0x34] sm:$0xf]
    %v1676 = vld [vmem:[#allocation10 + $0x38] sm:$0xf]
    %v1677 = vld [vmem:[#allocation10 + $0x3c] sm:$0xf]
    %v1678 = vld [vmem:[#allocation10 + $0x40] sm:$0xf]
    %v1679 = vld [vmem:[#allocation10 + $0x44] sm:$0xf]
    %v1680 = vld [vmem:[#allocation10 + $0x48] sm:$0xf]
    %v1681 = vld [vmem:[#allocation10 + $0x4c] sm:$0xf]
    %v1682 = vld [vmem:[#allocation10 + $0x50] sm:$0xf]
    %v1683 = vld [vmem:[#allocation10 + $0x54] sm:$0xf]
    %v1684 = vld [vmem:[#allocation10 + $0x58] sm:$0xf]
    %v1685 = vld [vmem:[#allocation10 + $0x5c] sm:$0xf]
    %v1686 = vld [vmem:[#allocation10 + $0x60] sm:$0xf]
    %v1687 = vld [vmem:[#allocation10 + $0x64] sm:$0xf]
    %v1688 = vld [vmem:[#allocation10 + $0x68] sm:$0xf]
    %v1689 = vld [vmem:[#allocation10 + $0x6c] sm:$0xf]
    %v1690 = vld [vmem:[#allocation10 + $0x70] sm:$0xf]
    %v1691 = vld [vmem:[#allocation10 + $0x74] sm:$0xf]
    %v1692 = vld [vmem:[#allocation10 + $0x78] sm:$0xf]
    %v1693 = vld [vmem:[#allocation10 + $0x7c] sm:$0xf]
    %v1694 = vld [vmem:[#allocation10 + $0x80] sm:$0xf]
    %v1695 = vld [vmem:[#allocation10 + $0x84] sm:$0xf]
    %v1696 = vld [vmem:[#allocation10 + $0x88] sm:$0xf]
    %v1697 = vld [vmem:[#allocation10 + $0x8c] sm:$0xf]
    %v1698 = vld [vmem:[#allocation10 + $0x90] sm:$0xf]
    %v1699 = vld [vmem:[#allocation10 + $0x94] sm:$0xf]
    %v1700 = vld [vmem:[#allocation10 + $0x98] sm:$0xf]
    %v1701 = vld [vmem:[#allocation10 + $0x9c] sm:$0xf]
    %v1702 = vld [vmem:[#allocation10 + $0xa0] sm:$0xf]
    %v1703 = vld [vmem:[#allocation10 + $0xa4] sm:$0xf]
    %v1704 = vld [vmem:[#allocation10 + $0xa8] sm:$0xf]
    %v1705 = vld [vmem:[#allocation10 + $0xac] sm:$0xf]
    %v1706 = vld [vmem:[#allocation10 + $0xb0] sm:$0xf]
    %v1707 = vld [vmem:[#allocation10 + $0xb4] sm:$0xf]
    %v1708 = vld [vmem:[#allocation10 + $0xb8] sm:$0xf]
    %v1709 = vld [vmem:[#allocation10 + $0xbc] sm:$0xf]
    %v1710 = vld [vmem:[#allocation10 + $0xc0] sm:$0xf]
    %v1711 = vld [vmem:[#allocation10 + $0xc4] sm:$0xf]
    %v1712 = vld [vmem:[#allocation10 + $0xc8] sm:$0xf]
    %v1713 = vld [vmem:[#allocation10 + $0xcc] sm:$0xf]
    %v1714 = vld [vmem:[#allocation10 + $0xd0] sm:$0xf]
    %v1715 = vld [vmem:[#allocation10 + $0xd4] sm:$0xf]
    %v1716 = vld [vmem:[#allocation10 + $0xd8] sm:$0xf]
    %v1717 = vld [vmem:[#allocation10 + $0xdc] sm:$0xf]
    %v1718 = vld [vmem:[#allocation10 + $0xe0] sm:$0xf]
    %v1719 = vld [vmem:[#allocation10 + $0xe4] sm:$0xf]
    %v1720 = vld [vmem:[#allocation10 + $0xe8] sm:$0xf]
    %v1721 = vld [vmem:[#allocation10 + $0xec] sm:$0xf]
    %v1722 = vld [vmem:[#allocation10 + $0xf0] sm:$0xf]
    %v1723 = vld [vmem:[#allocation10 + $0xf4] sm:$0xf]
    %v1724 = vld [vmem:[#allocation10 + $0xf8] sm:$0xf]
    %v1725 = vld [vmem:[#allocation10 + $0xfc] sm:$0xf]
    %v1726 = vld [vmem:[%s8] sm:$0x1]
    %v1728 = vlaneseq
    %v1729 = vshrl.u32 %v1728, 7
    %v1730 = vsub.s32 0, %v1729
    %v1731 = vrot.slane %v1726, %v1730
    %v1797 = vunpack.c.l.b16 %v1662
    %v1798 = vunpack.c.l.b16 %v1663
    %v1799 = vunpack.c.l.b16 %v1664
    %v1800 = vunpack.c.l.b16 %v1665
    %v1801 = vunpack.c.l.b16 %v1666
    %v1802 = vunpack.c.l.b16 %v1667
    %v1803 = vunpack.c.l.b16 %v1668
    %v1804 = vunpack.c.l.b16 %v1669
    %v1805 = vunpack.c.l.b16 %v1670
    %v1806 = vunpack.c.l.b16 %v1671
    %v1807 = vunpack.c.l.b16 %v1672
    %v1808 = vunpack.c.l.b16 %v1673
    %v1809 = vunpack.c.l.b16 %v1674
    %v1810 = vunpack.c.l.b16 %v1675
    %v1811 = vunpack.c.l.b16 %v1676
    %v1812 = vunpack.c.l.b16 %v1677
    %v1813 = vunpack.c.l.b16 %v1678
    %v1814 = vunpack.c.l.b16 %v1679
    %v1815 = vunpack.c.l.b16 %v1680
    %v1816 = vunpack.c.l.b16 %v1681
    %v1817 = vunpack.c.l.b16 %v1682
    %v1818 = vunpack.c.l.b16 %v1683
    %v1819 = vunpack.c.l.b16 %v1684
    %v1820 = vunpack.c.l.b16 %v1685
    %v1821 = vunpack.c.l.b16 %v1686
    %v1822 = vunpack.c.l.b16 %v1687
    %v1823 = vunpack.c.l.b16 %v1688
    %v1824 = vunpack.c.l.b16 %v1689
    %v1825 = vunpack.c.l.b16 %v1690
    %v1826 = vunpack.c.l.b16 %v1691
    %v1827 = vunpack.c.l.b16 %v1692
    %v1828 = vunpack.c.l.b16 %v1693
    %v1829 = vunpack.c.l.b16 %v1694
    %v1830 = vunpack.c.l.b16 %v1695
    %v1831 = vunpack.c.l.b16 %v1696
    %v1832 = vunpack.c.l.b16 %v1697
    %v1833 = vunpack.c.l.b16 %v1698
    %v1834 = vunpack.c.l.b16 %v1699
    %v1835 = vunpack.c.l.b16 %v1700
    %v1836 = vunpack.c.l.b16 %v1701
    %v1837 = vunpack.c.l.b16 %v1702
    %v1838 = vunpack.c.l.b16 %v1703
    %v1839 = vunpack.c.l.b16 %v1704
    %v1840 = vunpack.c.l.b16 %v1705
    %v1841 = vunpack.c.l.b16 %v1706
    %v1842 = vunpack.c.l.b16 %v1707
    %v1843 = vunpack.c.l.b16 %v1708
    %v1844 = vunpack.c.l.b16 %v1709
    %v1845 = vunpack.c.l.b16 %v1710
    %v1846 = vunpack.c.l.b16 %v1711
    %v1847 = vunpack.c.l.b16 %v1712
    %v1848 = vunpack.c.l.b16 %v1713
    %v1849 = vunpack.c.l.b16 %v1714
    %v1850 = vunpack.c.l.b16 %v1715
    %v1851 = vunpack.c.l.b16 %v1716
    %v1852 = vunpack.c.l.b16 %v1717
    %v1853 = vunpack.c.l.b16 %v1718
    %v1854 = vunpack.c.l.b16 %v1719
    %v1855 = vunpack.c.l.b16 %v1720
    %v1856 = vunpack.c.l.b16 %v1721
    %v1857 = vunpack.c.l.b16 %v1722
    %v1858 = vunpack.c.l.b16 %v1723
    %v1859 = vunpack.c.l.b16 %v1724
    %v1860 = vunpack.c.l.b16 %v1725
    %v1861 = vpack.c.b16 %v1798, %v1797
    %v1862 = vpack.c.b16 %v1800, %v1799
    %v1863 = vpack.c.b16 %v1802, %v1801
    %v1864 = vpack.c.b16 %v1804, %v1803
    %v1865 = vpack.c.b16 %v1806, %v1805
    %v1866 = vpack.c.b16 %v1808, %v1807
    %v1867 = vpack.c.b16 %v1810, %v1809
    %v1868 = vpack.c.b16 %v1812, %v1811
    %v1869 = vpack.c.b16 %v1814, %v1813
    %v1870 = vpack.c.b16 %v1816, %v1815
    %v1871 = vpack.c.b16 %v1818, %v1817
    %v1872 = vpack.c.b16 %v1820, %v1819
    %v1873 = vpack.c.b16 %v1822, %v1821
    %v1874 = vpack.c.b16 %v1824, %v1823
    %v1875 = vpack.c.b16 %v1826, %v1825
    %v1876 = vpack.c.b16 %v1828, %v1827
    %v1877 = vpack.c.b16 %v1830, %v1829
    %v1878 = vpack.c.b16 %v1832, %v1831
    %v1879 = vpack.c.b16 %v1834, %v1833
    %v1880 = vpack.c.b16 %v1836, %v1835
    %v1881 = vpack.c.b16 %v1838, %v1837
    %v1882 = vpack.c.b16 %v1840, %v1839
    %v1883 = vpack.c.b16 %v1842, %v1841
    %v1884 = vpack.c.b16 %v1844, %v1843
    %v1885 = vpack.c.b16 %v1846, %v1845
    %v1886 = vpack.c.b16 %v1848, %v1847
    %v1887 = vpack.c.b16 %v1850, %v1849
    %v1888 = vpack.c.b16 %v1852, %v1851
    %v1889 = vpack.c.b16 %v1854, %v1853
    %v1890 = vpack.c.b16 %v1856, %v1855
    %v1891 = vpack.c.b16 %v1858, %v1857
    %v1892 = vpack.c.b16 %v1860, %v1859
    %1925 = vmatprep.subr.bf16.mxu0 0
    %1926 = vmatpush1.bf16.msra.mxu0 %v1861
    %1927 = vmatprep.subr.bf16.mxu0 0
    %1928 = vmatpush1.bf16.msra.mxu0 %v1862
    %1929 = vmatprep.subr.bf16.mxu0 0
    %1930 = vmatpush1.bf16.msra.mxu0 %v1863
    %1931 = vmatprep.subr.bf16.mxu0 0
    %1932 = vmatpush1.bf16.msra.mxu0 %v1864
    %1933 = vmatprep.subr.bf16.mxu0 0
    %1934 = vmatpush1.bf16.msra.mxu0 %v1865
    %1935 = vmatprep.subr.bf16.mxu0 0
    %1936 = vmatpush1.bf16.msra.mxu0 %v1866
    %1937 = vmatprep.subr.bf16.mxu0 0
    %1938 = vmatpush1.bf16.msra.mxu0 %v1867
    %1939 = vmatprep.subr.bf16.mxu0 0
    %1940 = vmatpush1.bf16.msra.mxu0 %v1868
    %1941 = vmatprep.subr.bf16.mxu0 0
    %1942 = vmatpush1.bf16.msra.mxu0 %v1869
    %1943 = vmatprep.subr.bf16.mxu0 0
    %1944 = vmatpush1.bf16.msra.mxu0 %v1870
    %1945 = vmatprep.subr.bf16.mxu0 0
    %1946 = vmatpush1.bf16.msra.mxu0 %v1871
    %1947 = vmatprep.subr.bf16.mxu0 0
    %1948 = vmatpush1.bf16.msra.mxu0 %v1872
    %1949 = vmatprep.subr.bf16.mxu0 0
    %1950 = vmatpush1.bf16.msra.mxu0 %v1873
    %1951 = vmatprep.subr.bf16.mxu0 0
    %1952 = vmatpush1.bf16.msra.mxu0 %v1874
    %1953 = vmatprep.subr.bf16.mxu0 0
    %1954 = vmatpush1.bf16.msra.mxu0 %v1875
    %1955 = vmatprep.subr.bf16.mxu0 0
    %1956 = vmatpush1.bf16.msra.mxu0 %v1876
    %1957 = vmatprep.mubr.bf16.mxu0 %v1659
    %1958 = vmatmul.mubr.bf16.gmra.mrb[0].mxu0 %v1658
    %v1959 = vpop.f32.mrb[0].mxu0
    %v1960 = vadd.f32 %v1731, %v1959
    %v1961 = vpop.f32.mrb[0].mxu0
    %v1962 = vpop.f32.mrb[0].mxu0
    %v1963 = vadd.f32 %v1731, %v1962
    %v1964 = vpop.f32.mrb[0].mxu0
    %1965 = vdwg.mxu0
    %1966 = vmatprep.subr.bf16.mxu0 0
    %1967 = vmatpush1.bf16.msra.mxu0 %v1877
    %1968 = vmatprep.subr.bf16.mxu0 0
    %1969 = vmatpush1.bf16.msra.mxu0 %v1878
    %1970 = vmatprep.subr.bf16.mxu0 0
    %1971 = vmatpush1.bf16.msra.mxu0 %v1879
    %1972 = vmatprep.subr.bf16.mxu0 0
    %1973 = vmatpush1.bf16.msra.mxu0 %v1880
    %1974 = vmatprep.subr.bf16.mxu0 0
    %1975 = vmatpush1.bf16.msra.mxu0 %v1881
    %1976 = vmatprep.subr.bf16.mxu0 0
    %1977 = vmatpush1.bf16.msra.mxu0 %v1882
    %1978 = vmatprep.subr.bf16.mxu0 0
    %1979 = vmatpush1.bf16.msra.mxu0 %v1883
    %1980 = vmatprep.subr.bf16.mxu0 0
    %1981 = vmatpush1.bf16.msra.mxu0 %v1884
    %1982 = vmatprep.subr.bf16.mxu0 0
    %1983 = vmatpush1.bf16.msra.mxu0 %v1885
    %1984 = vmatprep.subr.bf16.mxu0 0
    %1985 = vmatpush1.bf16.msra.mxu0 %v1886
    %1986 = vmatprep.subr.bf16.mxu0 0
    %1987 = vmatpush1.bf16.msra.mxu0 %v1887
    %1988 = vmatprep.subr.bf16.mxu0 0
    %1989 = vmatpush1.bf16.msra.mxu0 %v1888
    %1990 = vmatprep.subr.bf16.mxu0 0
    %1991 = vmatpush1.bf16.msra.mxu0 %v1889
    %1992 = vmatprep.subr.bf16.mxu0 0
    %1993 = vmatpush1.bf16.msra.mxu0 %v1890
    %1994 = vmatprep.subr.bf16.mxu0 0
    %1995 = vmatpush1.bf16.msra.mxu0 %v1891
    %1996 = vmatprep.subr.bf16.mxu0 0
    %1997 = vmatpush1.bf16.msra.mxu0 %v1892
    %1998 = vmatprep.mubr.bf16.mxu0 %v1661
    %1999 = vmatmul.mubr.bf16.gmra.mrb[0].mxu0 %v1660
    %v2000 = vpop.f32.mrb[0].mxu0
    %v2001 = vadd.f32 %v1960, %v2000
    %v2002 = vpop.f32.mrb[0].mxu0
    %v2003 = vpop.f32.mrb[0].mxu0
    %v2004 = vadd.f32 %v1963, %v2003
    %v2005 = vpop.f32.mrb[0].mxu0
    %2006 = vdwg.mxu0
    %2007 = vmax.xlane.f32.xlu0 %v2001
    %v2008 = vpop.xlane.xlu0 %2007
    %2009 = vmax.xlane.f32.xlu0 %v2004
    %v2010 = vpop.xlane.xlu0 %2009
    %v2011 = vsub.f32 %v2001, %v2008
    %v2012 = vsub.f32 %v2004, %v2010
    %v2013 = vmul.f32 %v2011, 1.442695
    %v2014 = vpow.pop %v2013
    %v2015 = vmul.f32 %v2012, 1.442695
    %v2016 = vpow.pop %v2015
    %2017 = vadd.xlane.f32.xlu0 %v2014
    %v2018 = vpop.xlane.xlu0 %2017
    %2019 = vadd.xlane.f32.xlu0 %v2016
    %v2020 = vpop.xlane.xlu0 %2019
    %v2021 = vlog2.pop %v2018
    %v2022 = vmul.f32 %v2021, 0.6931472
    %v2023 = vlog2.pop %v2020
    %v2024 = vmul.f32 %v2023, 0.6931472
    %v2025 = vsub.f32 %v2011, %v2022
    %v2026 = vsub.f32 %v2012, %v2024
    %2027 = vst [vmem:[#allocation11] sm:$0xff] %v2025
    %2028 = vst [vmem:[#allocation11 + $0x8] sm:$0xff] %v2026
    // Predicated region
    $region58: #{tpu_custom_call.1} parent=1 // pred_check
      _
    $region59: #{tpu_custom_call.1} parent=1 // pred_check_branch
      %2030 = sbr.rel (0) target = $region61
    $region60: #{tpu_custom_call.1} parent=1 // pred_region
      %s2032 = ssub.s32 256, 256
      %2033 = vsyncadd [#allocation4], %s2032
      %s2034 = sshll.u32 [#allocation11], 4
      %s2035 = int_to_ptr.vmem [resolvable:$true] %s2034
      %2040 = dma.vmem_to_hbm [thread:$0]  %s2035, 256, %s9, [#allocation4], 128, 128, 8
    $region61: #{tpu_custom_call.1} parent=1 // pred_fallthru
      _
    // Predicated region
    $region62: #{tpu_custom_call.1} parent=1 // pred_check
      _
    $region63: #{tpu_custom_call.1} parent=1 // pred_check_branch
      %2042 = sbr.rel (0) target = $region65
    $region64: #{tpu_custom_call.1} parent=1 // pred_region
      %2043 = dma.done [#allocation4], 256
    $region65: #{tpu_custom_call.1} parent=1 // pred_fallthru
      _
    %2044 = vsyncpa [#allocation3], 1
    %2045 = vsyncpa [#allocation6], 1
    %2046 = vsyncpa [#allocation9], 1
    %2047 = vsyncpa [#allocation4], 1

</llo_original>
